<compile_context>
chip_gen: v7x
topology: tpu7x:2x2x1
jax: 0.10.0
libtpu: 0.0.40
codegen_flags: <defaults>
</compile_context>

<pallas_src>
import jax
import jax.numpy as jnp
from jax.experimental import pallas as pl
from jax.experimental.pallas import tpu as pltpu


def _nf_kernel(z_ref, wt_ref, u_ref, b_ref, uw_ref, uwdet_ref, cmask_ref,
               zk_ref, logq_ref):
    """One grid step processes a (tn, dim) tile of rows through all K flows."""
    z = z_ref[...]                                    # (tn, dim) f32
    wt = wt_ref[...]                                  # (dim, K)
    u = u_ref[...]                                    # (K, dim)
    b_row = b_ref[...]                                # (1, K)
    uw_row = uw_ref[...]                              # (1, K)   u_k . w_k
    uwdet_row = uwdet_ref[...]                        # (1, K)   same, but 0 at k=0
    cmask = cmask_ref[...]                            # (K, K)   strictly upper: C[j,k]=u_j.w_k, j<k

    K = wt.shape[1]

    # All K pre-activations in one MXU matmul.
    a_mat = jnp.dot(z, wt, preferred_element_type=jnp.float32) + b_row   # (tn, K)

    # Tiny telescoped recurrence: column k is final before it is read, and its
    # tanh is scattered (rank-1 update) into all later columns via cmask row k.
    for k in range(K):                                # K is small & static -> unrolled
        t_k = jnp.tanh(a_mat[:, k:k + 1])             # (tn, 1)
        a_mat = a_mat + t_k * cmask[k:k + 1, :]       # (tn, K) rank-1 update

    t_mat = jnp.tanh(a_mat)                           # (tn, K)

    # zk = z + T @ U_eff  (single MXU matmul instead of K broadcast passes).
    zk = z + jnp.dot(t_mat, u, preferred_element_type=jnp.float32)
    zk_ref[...] = zk.astype(zk_ref.dtype)

    # log|det J|: flow 0 evaluated at the pre-transform z (a_det = a); flows
    # k>=1 at the post-transform z_{k+1}: a_det = a + (u.w) * tanh(a).
    a_det = a_mat + uwdet_row * t_mat
    td = jnp.tanh(a_det)
    abs_det = jnp.abs(1.0 + (1.0 - td * td) * uw_row)           # (tn, K)
    logq = jnp.sum(jnp.log(1e-4 + abs_det), axis=1, keepdims=True)   # (tn, 1)
    logq_ref[...] = logq.astype(logq_ref.dtype)


def normalizing_flow(z, W, B, U, *, tn=256):
    """z: (N, dim).  W,U: (K, dim).  B: (K,).  Returns (zk (N,dim), log_qk (1,N))."""
    N, dim = z.shape
    K = W.shape[0]
    assert tn % 8 == 0

    z = z.astype(jnp.float32)
    W = W.astype(jnp.float32)
    U = U.astype(jnp.float32)
    B = B.astype(jnp.float32)

    # ---- u -> u_hat correction (parameter-only, resolved once; mirrors the
    # lazy in-place mutation in PlanarFlow).  softplus avoids exp overflow. ----
    wtu = jnp.sum(U * W, axis=-1, keepdims=True)                 # (K, 1)
    m_wtu = -1.0 + jax.nn.softplus(wtu)
    w_norm_sq = jnp.sum(W * W, axis=-1, keepdims=True)
    U_eff = jnp.where(wtu < -1.0, U + (m_wtu - wtu) * W / w_norm_sq, U)

    # ---- parameter-only precomputes hoisted out of the kernel ----
    WT = W.T                                                     # (dim, K)
    C = U_eff @ W.T                                              # (K, K), C[j,k] = u_j . w_k
    uw = jnp.diagonal(C).reshape(1, K)                           # (1, K)   u_k . w_k
    uwdet = uw.at[0, 0].set(0.0)                                 # flow 0's log-det uses pre-transform z
    cmask = jnp.triu(C, k=1)                                     # strictly-upper coupling matrix
    b_row = B.reshape(1, K)

    # Pad rows so the grid tiles evenly (padded rows are sliced off afterwards).
    n_tiles = pl.cdiv(N, tn)
    N_pad = n_tiles * tn
    z_in = z if N_pad == N else jnp.zeros((N_pad, dim), jnp.float32).at[:N].set(z)

    zk, logq = pl.pallas_call(
        _nf_kernel,
        out_shape=(
            jax.ShapeDtypeStruct((N_pad, dim), jnp.float32),
            jax.ShapeDtypeStruct((N_pad, 1), jnp.float32),
        ),
        grid_spec=pltpu.PrefetchScalarGridSpec(
            num_scalar_prefetch=0,
            grid=(n_tiles,),
            in_specs=[
                pl.BlockSpec((tn, dim), lambda i: (i, 0)),   # z tile
                pl.BlockSpec((dim, K), lambda i: (0, 0)),    # W^T   (full)
                pl.BlockSpec((K, dim), lambda i: (0, 0)),    # U_eff (full)
                pl.BlockSpec((1, K), lambda i: (0, 0)),      # b row
                pl.BlockSpec((1, K), lambda i: (0, 0)),      # uw row
                pl.BlockSpec((1, K), lambda i: (0, 0)),      # uwdet row
                pl.BlockSpec((K, K), lambda i: (0, 0)),      # cmask
            ],
            out_specs=[
                pl.BlockSpec((tn, dim), lambda i: (i, 0)),   # zk tile
                pl.BlockSpec((tn, 1), lambda i: (i, 0)),     # per-row log_det
            ],
        ),
        compiler_params=pltpu.CompilerParams(
            dimension_semantics=("parallel",),
        ),
    )(z_in, WT, U_eff, b_row, uw, uwdet, cmask)

    # TODO(synk): log_qk kept as a (N,1) kernel output (transposed here) rather
    # than a lane-dense (1,N) store, to avoid an in-kernel (tn,1)->(1,tn) relayout.
    return zk[:N], logq[:N].T                                    # log_qk: (1, N)


def _reference(z, W, B, U):
    """Pure-JAX reference mirroring the PyTorch module, for a sanity check."""
    wtu = jnp.sum(U * W, axis=-1, keepdims=True)
    U_hat = U + ((-1.0 + jax.nn.softplus(wtu)) - wtu) * W / jnp.sum(W * W, axis=-1, keepdims=True)
    U_eff = jnp.where(wtu < -1.0, U_hat, U)

    def fwd(k, zz):
        return zz + U_eff[k:k + 1] * jnp.tanh(zz @ W[k:k + 1].T + B[k])

    def log_det(k, zz):
        a = zz @ W[k:k + 1].T + B[k]
        psi = (1.0 - jnp.tanh(a) ** 2) * W[k:k + 1]
        abs_det = jnp.abs(1.0 + U_eff[k:k + 1] @ psi.T)          # (1, N)
        return jnp.log(1e-4 + abs_det)

    K = W.shape[0]
    zk = fwd(0, z)
    log_qk = log_det(0, z)
    for k in range(1, K):
        zk = fwd(k, zk)
        log_qk = log_qk + log_det(k, zk)
    return zk, log_qk


if __name__ == "__main__":
    key = jax.random.PRNGKey(0)
    K, dim, N = 4, 32, 512

    kz, kw, kb, ku = jax.random.split(key, 4)
    z = jax.random.normal(kz, (N, dim), dtype=jnp.float32)
    # PlanarFlow.__init__: w,u ~ N(0, 0.1), b ~ N(0, 0.1)
    W = 0.1 * jax.random.normal(kw, (K, dim), dtype=jnp.float32)
    B = 0.1 * jax.random.normal(kb, (K,), dtype=jnp.float32)
    U = 0.1 * jax.random.normal(ku, (K, dim), dtype=jnp.float32)

    zk, log_qk = normalizing_flow(z, W, B, U, tn=256)
    jax.block_until_ready((zk, log_qk))

    zk_ref, log_qk_ref = _reference(z, W, B, U)
    assert zk.shape == (N, dim) and log_qk.shape == (1, N)
    assert jnp.allclose(zk, zk_ref, atol=1e-4, rtol=1e-4)
    assert jnp.allclose(log_qk, log_qk_ref, atol=1e-4, rtol=1e-4)

    print("KERNEL_OK")
</pallas_src>

<mosaic_0001>
module attributes {stable_mosaic.version = 11 : i64} {
  func.func @_nf_kernel(%arg0: i32, %arg1: memref<256x32xf32, #tpu.memory_space<vmem>>, %arg2: memref<32x4xf32, #tpu.memory_space<vmem>>, %arg3: memref<4x32xf32, #tpu.memory_space<vmem>>, %arg4: memref<1x4xf32, #tpu.memory_space<vmem>>, %arg5: memref<1x4xf32, #tpu.memory_space<vmem>>, %arg6: memref<1x4xf32, #tpu.memory_space<vmem>>, %arg7: memref<4x4xf32, #tpu.memory_space<vmem>>, %arg8: memref<256x32xf32, #tpu.memory_space<vmem>>, %arg9: memref<256x1xf32, #tpu.memory_space<vmem>>) attributes {dimension_semantics = [#tpu.dimension_semantics<parallel>], iteration_bounds = array<i64: 2>, scalar_prefetch = 0 : i64, scratch_operands = 0 : i64, tpu.core_type = #tpu.core_type<tc>, window_params = [{transform_indices = @transform_0, window_bounds = array<i64: 256, 32>}, {pipeline_mode = #tpu.pipeline_mode<synchronous>, transform_indices = @transform_1, window_bounds = array<i64: 32, 4>}, {pipeline_mode = #tpu.pipeline_mode<synchronous>, transform_indices = @transform_2, window_bounds = array<i64: 4, 32>}, {pipeline_mode = #tpu.pipeline_mode<synchronous>, transform_indices = @transform_3, window_bounds = array<i64: 1, 4>}, {pipeline_mode = #tpu.pipeline_mode<synchronous>, transform_indices = @transform_4, window_bounds = array<i64: 1, 4>}, {pipeline_mode = #tpu.pipeline_mode<synchronous>, transform_indices = @transform_5, window_bounds = array<i64: 1, 4>}, {pipeline_mode = #tpu.pipeline_mode<synchronous>, transform_indices = @transform_6, window_bounds = array<i64: 4, 4>}, {transform_indices = @transform_7, window_bounds = array<i64: 256, 32>}, {transform_indices = @transform_8, window_bounds = array<i64: 256, 1>}]} {
    %c0 = arith.constant 0 : index
    %c0_0 = arith.constant 0 : index
    %0 = vector.load %arg1[%c0, %c0_0] : memref<256x32xf32, #tpu.memory_space<vmem>>, vector<256x32xf32>
    %c0_1 = arith.constant 0 : index
    %c0_2 = arith.constant 0 : index
    %1 = vector.load %arg2[%c0_1, %c0_2] : memref<32x4xf32, #tpu.memory_space<vmem>>, vector<32x4xf32>
    %c0_3 = arith.constant 0 : index
    %c0_4 = arith.constant 0 : index
    %2 = vector.load %arg3[%c0_3, %c0_4] : memref<4x32xf32, #tpu.memory_space<vmem>>, vector<4x32xf32>
    %c0_5 = arith.constant 0 : index
    %c0_6 = arith.constant 0 : index
    %3 = vector.load %arg4[%c0_5, %c0_6] : memref<1x4xf32, #tpu.memory_space<vmem>>, vector<1x4xf32>
    %c0_7 = arith.constant 0 : index
    %c0_8 = arith.constant 0 : index
    %4 = vector.load %arg5[%c0_7, %c0_8] : memref<1x4xf32, #tpu.memory_space<vmem>>, vector<1x4xf32>
    %c0_9 = arith.constant 0 : index
    %c0_10 = arith.constant 0 : index
    %5 = vector.load %arg6[%c0_9, %c0_10] : memref<1x4xf32, #tpu.memory_space<vmem>>, vector<1x4xf32>
    %c0_11 = arith.constant 0 : index
    %c0_12 = arith.constant 0 : index
    %6 = vector.load %arg7[%c0_11, %c0_12] : memref<4x4xf32, #tpu.memory_space<vmem>>, vector<4x4xf32>
    %cst = arith.constant dense<0.000000e+00> : vector<256x4xf32>
    %7 = tpu.matmul %0, %1, %cst {dimension_numbers = #tpu.dot_dimension_numbers<[1], [0], [0], [1], [0, 0, 1, 1], [], []>} : vector<256x32xf32>, vector<32x4xf32>, vector<256x4xf32> -> vector<256x4xf32>
    %8 = vector.broadcast %3 : vector<1x4xf32> to vector<256x4xf32>
    %9 = arith.addf %7, %8 : vector<256x4xf32>
    %10 = vector.extract_strided_slice %9 {offsets = [0, 0], sizes = [256, 1], strides = [1, 1]} : vector<256x4xf32> to vector<256x1xf32>
    %11 = math.tanh %10 : vector<256x1xf32>
    %12 = vector.extract_strided_slice %6 {offsets = [0, 0], sizes = [1, 4], strides = [1, 1]} : vector<4x4xf32> to vector<1x4xf32>
    %13 = vector.broadcast %11 : vector<256x1xf32> to vector<256x4xf32>
    %14 = vector.broadcast %12 : vector<1x4xf32> to vector<256x4xf32>
    %15 = arith.mulf %13, %14 : vector<256x4xf32>
    %16 = arith.addf %9, %15 : vector<256x4xf32>
    %17 = vector.extract_strided_slice %16 {offsets = [0, 1], sizes = [256, 1], strides = [1, 1]} : vector<256x4xf32> to vector<256x1xf32>
    %18 = math.tanh %17 : vector<256x1xf32>
    %19 = vector.extract_strided_slice %6 {offsets = [1, 0], sizes = [1, 4], strides = [1, 1]} : vector<4x4xf32> to vector<1x4xf32>
    %20 = vector.broadcast %18 : vector<256x1xf32> to vector<256x4xf32>
    %21 = vector.broadcast %19 : vector<1x4xf32> to vector<256x4xf32>
    %22 = arith.mulf %20, %21 : vector<256x4xf32>
    %23 = arith.addf %16, %22 : vector<256x4xf32>
    %24 = vector.extract_strided_slice %23 {offsets = [0, 2], sizes = [256, 1], strides = [1, 1]} : vector<256x4xf32> to vector<256x1xf32>
    %25 = math.tanh %24 : vector<256x1xf32>
    %26 = vector.extract_strided_slice %6 {offsets = [2, 0], sizes = [1, 4], strides = [1, 1]} : vector<4x4xf32> to vector<1x4xf32>
    %27 = vector.broadcast %25 : vector<256x1xf32> to vector<256x4xf32>
    %28 = vector.broadcast %26 : vector<1x4xf32> to vector<256x4xf32>
    %29 = arith.mulf %27, %28 : vector<256x4xf32>
    %30 = arith.addf %23, %29 : vector<256x4xf32>
    %31 = vector.extract_strided_slice %30 {offsets = [0, 3], sizes = [256, 1], strides = [1, 1]} : vector<256x4xf32> to vector<256x1xf32>
    %32 = math.tanh %31 : vector<256x1xf32>
    %33 = vector.extract_strided_slice %6 {offsets = [3, 0], sizes = [1, 4], strides = [1, 1]} : vector<4x4xf32> to vector<1x4xf32>
    %34 = vector.broadcast %32 : vector<256x1xf32> to vector<256x4xf32>
    %35 = vector.broadcast %33 : vector<1x4xf32> to vector<256x4xf32>
    %36 = arith.mulf %34, %35 : vector<256x4xf32>
    %37 = arith.addf %30, %36 : vector<256x4xf32>
    %38 = math.tanh %37 : vector<256x4xf32>
    %cst_13 = arith.constant dense<0.000000e+00> : vector<256x32xf32>
    %39 = tpu.matmul %38, %2, %cst_13 {dimension_numbers = #tpu.dot_dimension_numbers<[1], [0], [0], [1], [0, 0, 1, 1], [], []>} : vector<256x4xf32>, vector<4x32xf32>, vector<256x32xf32> -> vector<256x32xf32>
    %40 = arith.addf %0, %39 : vector<256x32xf32>
    %c0_14 = arith.constant 0 : index
    %c0_15 = arith.constant 0 : index
    %41 = vector.load %arg8[%c0_14, %c0_15] : memref<256x32xf32, #tpu.memory_space<vmem>>, vector<256x32xf32>
    tpu.vector_store %arg8[%c0_14, %c0_15], %40 {strides = array<i32>} : memref<256x32xf32, #tpu.memory_space<vmem>>, vector<256x32xf32>,
    %42 = vector.broadcast %5 : vector<1x4xf32> to vector<256x4xf32>
    %43 = arith.mulf %42, %38 : vector<256x4xf32>
    %44 = arith.addf %37, %43 : vector<256x4xf32>
    %45 = math.tanh %44 : vector<256x4xf32>
    %46 = arith.mulf %45, %45 : vector<256x4xf32>
    %cst_16 = arith.constant 1.000000e+00 : f32
    %47 = vector.broadcast %cst_16 : f32 to vector<256x4xf32>
    %48 = arith.subf %47, %46 : vector<256x4xf32>
    %49 = vector.broadcast %4 : vector<1x4xf32> to vector<256x4xf32>
    %50 = arith.mulf %48, %49 : vector<256x4xf32>
    %cst_17 = arith.constant 1.000000e+00 : f32
    %51 = vector.broadcast %cst_17 : f32 to vector<256x4xf32>
    %52 = arith.addf %51, %50 : vector<256x4xf32>
    %53 = math.absf %52 : vector<256x4xf32>
    %cst_18 = arith.constant 9.99999974E-5 : f32
    %54 = vector.broadcast %cst_18 : f32 to vector<256x4xf32>
    %55 = arith.addf %54, %53 : vector<256x4xf32>
    %56 = math.log %55 : vector<256x4xf32>
    %cst_19 = arith.constant dense<0.000000e+00> : vector<256xf32>
    %57 = vector.multi_reduction <add>, %56, %cst_19 [1] : vector<256x4xf32> to vector<256xf32>
    %58 = vector.shape_cast %57 : vector<256xf32> to vector<256x1xf32>
    %c0_20 = arith.constant 0 : index
    %c0_21 = arith.constant 0 : index
    %59 = vector.load %arg9[%c0_20, %c0_21] : memref<256x1xf32, #tpu.memory_space<vmem>>, vector<256x1xf32>
    tpu.vector_store %arg9[%c0_20, %c0_21], %58 {strides = array<i32>} : memref<256x1xf32, #tpu.memory_space<vmem>>, vector<256x1xf32>,
    return
  }
  func.func @transform_0(%arg0: i32) -> (i32, i32) {
    %c0_i32 = arith.constant 0 : i32
    %c0_i32_0 = arith.constant 0 : i32
    return %arg0, %c0_i32 : i32, i32
  }
  func.func @transform_1(%arg0: i32) -> (i32, i32) {
    %c0_i32 = arith.constant 0 : i32
    %c0_i32_0 = arith.constant 0 : i32
    %c0_i32_1 = arith.constant 0 : i32
    return %c0_i32, %c0_i32_0 : i32, i32
  }
  func.func @transform_2(%arg0: i32) -> (i32, i32) {
    %c0_i32 = arith.constant 0 : i32
    %c0_i32_0 = arith.constant 0 : i32
    %c0_i32_1 = arith.constant 0 : i32
    return %c0_i32, %c0_i32_0 : i32, i32
  }
  func.func @transform_3(%arg0: i32) -> (i32, i32) {
    %c0_i32 = arith.constant 0 : i32
    %c0_i32_0 = arith.constant 0 : i32
    %c0_i32_1 = arith.constant 0 : i32
    return %c0_i32, %c0_i32_0 : i32, i32
  }
  func.func @transform_4(%arg0: i32) -> (i32, i32) {
    %c0_i32 = arith.constant 0 : i32
    %c0_i32_0 = arith.constant 0 : i32
    %c0_i32_1 = arith.constant 0 : i32
    return %c0_i32, %c0_i32_0 : i32, i32
  }
  func.func @transform_5(%arg0: i32) -> (i32, i32) {
    %c0_i32 = arith.constant 0 : i32
    %c0_i32_0 = arith.constant 0 : i32
    %c0_i32_1 = arith.constant 0 : i32
    return %c0_i32, %c0_i32_0 : i32, i32
  }
  func.func @transform_6(%arg0: i32) -> (i32, i32) {
    %c0_i32 = arith.constant 0 : i32
    %c0_i32_0 = arith.constant 0 : i32
    %c0_i32_1 = arith.constant 0 : i32
    return %c0_i32, %c0_i32_0 : i32, i32
  }
  func.func @transform_7(%arg0: i32) -> (i32, i32) {
    %c0_i32 = arith.constant 0 : i32
    %c0_i32_0 = arith.constant 0 : i32
    return %arg0, %c0_i32 : i32, i32
  }
  func.func @transform_8(%arg0: i32) -> (i32, i32) {
    %c0_i32 = arith.constant 0 : i32
    %c0_i32_0 = arith.constant 0 : i32
    return %arg0, %c0_i32 : i32, i32
  }
}

</mosaic_0001>

<llo_original>
// kernel: tpu_custom_call.1
$region0: #{tpu_custom_call.1}
  #allocation0 [shape = 'u32[]', space=smem, size = 0x4, offset = 0x4, fixed_abs, tag = 'smem constant byte address 0x4 - core index']
  #allocation1 [shape = 'u32[144,128]{1,0:T(1,128)}', space=vmem, size = 0x12000, scoped, tag = 'internal scratch']
  %s0 = inlined_call_operand.vmem [shape: f32[512,32], index: 0, kind: input, shape index: {}]
  %s1 = inlined_call_operand.vmem [shape: f32[32,4], index: 1, kind: input, shape index: {}]
  %s2 = inlined_call_operand.vmem [shape: f32[4,32], index: 2, kind: input, shape index: {}]
  %s3 = inlined_call_operand.vmem [shape: f32[1,4], index: 3, kind: input, shape index: {}]
  %s4 = inlined_call_operand.vmem [shape: f32[1,4], index: 4, kind: input, shape index: {}]
  %s5 = inlined_call_operand.vmem [shape: f32[1,4], index: 5, kind: input, shape index: {}]
  %s6 = inlined_call_operand.vmem [shape: f32[4,4], index: 6, kind: input, shape index: {}]
  %s7 = inlined_call_operand.vmem [shape: f32[512,32], index: 7, kind: output, shape index: {0}]
  %s8 = inlined_call_operand.vmem [shape: f32[512,1], index: 8, kind: output, shape index: {1}]
  %9 = xla_tuple %s7, %s8
  %s10 = sld [smem:[#allocation0]]
  $region69: #{tpu_custom_call.1} parent=0
    _
  %s12 = ssub.s32 1, %s10
  %s13 = scalar_select 0, %s12, %s10
  loop: start=0, step=1, limit=4
  $region2: #{tpu_custom_call.1} parent=0 // loop_pre_header
    _
  $region3: #{tpu_custom_call.1} parent=0 // loop_header
    %s15 = sphi 0, %s19
    %p16 = scmp.ge.s32.totalorder %s15, 4
    %s25 = sphi 0, %s27
    %s28 = sphi 0, %s25
    %s29 = sphi 0, %s28
    %s45 = sphi 0, %s29
    %s49 = sphi 0, %s49
    %s51 = sphi 0, %s49
    %s52 = sphi 0, %s51
    %s66 = sphi 0, %s52
    %s70 = sphi 0, %s70
    %s72 = sphi 0, %s70
    %s73 = sphi 0, %s72
    %s87 = sphi 0, %s73
    %s91 = sphi 0, %s91
    %s93 = sphi 0, %s91
    %s94 = sphi 0, %s93
    %s108 = sphi 0, %s94
    %s112 = sphi 0, %s112
    %s114 = sphi 0, %s112
    %s115 = sphi 0, %s114
    %s129 = sphi 0, %s115
    %s133 = sphi 0, %s133
    %s135 = sphi 0, %s133
    %s136 = sphi 0, %s135
    %s150 = sphi 0, %s136
    %s154 = sphi 0, %s154
    %s156 = sphi 0, %s154
    %s157 = sphi 0, %s156
    %s171 = sphi 0, %s157
    %s177 = sphi 0, %s179
    %s180 = sphi 0, %s177
    %s181 = sphi 0, %s180
    %s197 = sphi 0, %s181
    %s203 = sphi 0, %s205
    %s206 = sphi 0, %s203
    %s207 = sphi 0, %s206
    %s223 = sphi 0, %s207
  $region4: #{tpu_custom_call.1} parent=0 // loop_header_branch
    %18 = sbr.rel (%p16) target = $region8
  $region5: #{tpu_custom_call.1} parent=0 // loop_body
    %s20 = ssub.s32 %s15, 1
    %s21 = ssub.s32 %s15, 2
    %s22 = sadd.s32 %s15, 1
    %s23 = ssub.s32 %s15, %s22
    %p24 = scmp.eq.s32.totalorder %s23, 0
    %s26 = sadd.s32 %s25, 1
    %s27 = scalar_select %p24, %s25, %s26
    %p30 = pneg %p24
    %p31 = scmp.eq.s32.totalorder %s15, 1
    %p32 = por %p30, %p31
    %p33 = scmp.ne.s32.totalorder %s25, %s28
    %p34 = scmp.eq.s32.totalorder %s15, 0
    %p35 = por %p33, %p34
    %p36 = scmp.ne.s32.totalorder %s25, %s28
    %p37 = scmp.eq.s32.totalorder %s20, 1
    %p38 = por %p36, %p37
    %p39 = scmp.ne.s32.totalorder %s28, %s29
    %p40 = scmp.eq.s32.totalorder %s20, 0
    %p41 = por %p39, %p40
    %p42 = scmp.ne.s32.totalorder %s28, %s29
    %p43 = scmp.eq.s32.totalorder %s21, 1
    %p44 = por %p42, %p43
    %p46 = scmp.ne.s32.totalorder %s29, %s45
    %p47 = scmp.eq.s32.totalorder %s21, 0
    %p48 = por %p46, %p47
    %s50 = sadd.s32 %s49, 1
    %p53 = scmp.eq.s32.totalorder %s15, 1
    %p54 = scmp.ne.s32.totalorder %s49, %s51
    %p55 = scmp.eq.s32.totalorder %s15, 0
    %p56 = por %p54, %p55
    %p57 = scmp.ne.s32.totalorder %s49, %s51
    %p58 = scmp.eq.s32.totalorder %s20, 1
    %p59 = por %p57, %p58
    %p60 = scmp.ne.s32.totalorder %s51, %s52
    %p61 = scmp.eq.s32.totalorder %s20, 0
    %p62 = por %p60, %p61
    %p63 = scmp.ne.s32.totalorder %s51, %s52
    %p64 = scmp.eq.s32.totalorder %s21, 1
    %p65 = por %p63, %p64
    %p67 = scmp.ne.s32.totalorder %s52, %s66
    %p68 = scmp.eq.s32.totalorder %s21, 0
    %p69 = por %p67, %p68
    %s71 = sadd.s32 %s70, 1
    %p74 = scmp.eq.s32.totalorder %s15, 1
    %p75 = scmp.ne.s32.totalorder %s70, %s72
    %p76 = scmp.eq.s32.totalorder %s15, 0
    %p77 = por %p75, %p76
    %p78 = scmp.ne.s32.totalorder %s70, %s72
    %p79 = scmp.eq.s32.totalorder %s20, 1
    %p80 = por %p78, %p79
    %p81 = scmp.ne.s32.totalorder %s72, %s73
    %p82 = scmp.eq.s32.totalorder %s20, 0
    %p83 = por %p81, %p82
    %p84 = scmp.ne.s32.totalorder %s72, %s73
    %p85 = scmp.eq.s32.totalorder %s21, 1
    %p86 = por %p84, %p85
    %p88 = scmp.ne.s32.totalorder %s73, %s87
    %p89 = scmp.eq.s32.totalorder %s21, 0
    %p90 = por %p88, %p89
    %s92 = sadd.s32 %s91, 1
    %p95 = scmp.eq.s32.totalorder %s15, 1
    %p96 = scmp.ne.s32.totalorder %s91, %s93
    %p97 = scmp.eq.s32.totalorder %s15, 0
    %p98 = por %p96, %p97
    %p99 = scmp.ne.s32.totalorder %s91, %s93
    %p100 = scmp.eq.s32.totalorder %s20, 1
    %p101 = por %p99, %p100
    %p102 = scmp.ne.s32.totalorder %s93, %s94
    %p103 = scmp.eq.s32.totalorder %s20, 0
    %p104 = por %p102, %p103
    %p105 = scmp.ne.s32.totalorder %s93, %s94
    %p106 = scmp.eq.s32.totalorder %s21, 1
    %p107 = por %p105, %p106
    %p109 = scmp.ne.s32.totalorder %s94, %s108
    %p110 = scmp.eq.s32.totalorder %s21, 0
    %p111 = por %p109, %p110
    %s113 = sadd.s32 %s112, 1
    %p116 = scmp.eq.s32.totalorder %s15, 1
    %p117 = scmp.ne.s32.totalorder %s112, %s114
    %p118 = scmp.eq.s32.totalorder %s15, 0
    %p119 = por %p117, %p118
    %p120 = scmp.ne.s32.totalorder %s112, %s114
    %p121 = scmp.eq.s32.totalorder %s20, 1
    %p122 = por %p120, %p121
    %p123 = scmp.ne.s32.totalorder %s114, %s115
    %p124 = scmp.eq.s32.totalorder %s20, 0
    %p125 = por %p123, %p124
    %p126 = scmp.ne.s32.totalorder %s114, %s115
    %p127 = scmp.eq.s32.totalorder %s21, 1
    %p128 = por %p126, %p127
    %p130 = scmp.ne.s32.totalorder %s115, %s129
    %p131 = scmp.eq.s32.totalorder %s21, 0
    %p132 = por %p130, %p131
    %s134 = sadd.s32 %s133, 1
    %p137 = scmp.eq.s32.totalorder %s15, 1
    %p138 = scmp.ne.s32.totalorder %s133, %s135
    %p139 = scmp.eq.s32.totalorder %s15, 0
    %p140 = por %p138, %p139
    %p141 = scmp.ne.s32.totalorder %s133, %s135
    %p142 = scmp.eq.s32.totalorder %s20, 1
    %p143 = por %p141, %p142
    %p144 = scmp.ne.s32.totalorder %s135, %s136
    %p145 = scmp.eq.s32.totalorder %s20, 0
    %p146 = por %p144, %p145
    %p147 = scmp.ne.s32.totalorder %s135, %s136
    %p148 = scmp.eq.s32.totalorder %s21, 1
    %p149 = por %p147, %p148
    %p151 = scmp.ne.s32.totalorder %s136, %s150
    %p152 = scmp.eq.s32.totalorder %s21, 0
    %p153 = por %p151, %p152
    %s155 = sadd.s32 %s154, 1
    %p158 = scmp.eq.s32.totalorder %s15, 1
    %p159 = scmp.ne.s32.totalorder %s154, %s156
    %p160 = scmp.eq.s32.totalorder %s15, 0
    %p161 = por %p159, %p160
    %p162 = scmp.ne.s32.totalorder %s154, %s156
    %p163 = scmp.eq.s32.totalorder %s20, 1
    %p164 = por %p162, %p163
    %p165 = scmp.ne.s32.totalorder %s156, %s157
    %p166 = scmp.eq.s32.totalorder %s20, 0
    %p167 = por %p165, %p166
    %p168 = scmp.ne.s32.totalorder %s156, %s157
    %p169 = scmp.eq.s32.totalorder %s21, 1
    %p170 = por %p168, %p169
    %p172 = scmp.ne.s32.totalorder %s157, %s171
    %p173 = scmp.eq.s32.totalorder %s21, 0
    %p174 = por %p172, %p173
    %s175 = ssub.s32 %s15, %s22
    %p176 = scmp.eq.s32.totalorder %s175, 0
    %s178 = sadd.s32 %s177, 1
    %s179 = scalar_select %p176, %s177, %s178
    %p182 = pneg %p176
    %p183 = scmp.eq.s32.totalorder %s15, 1
    %p184 = por %p182, %p183
    %p185 = scmp.ne.s32.totalorder %s177, %s180
    %p186 = scmp.eq.s32.totalorder %s15, 0
    %p187 = por %p185, %p186
    %p188 = scmp.ne.s32.totalorder %s177, %s180
    %p189 = scmp.eq.s32.totalorder %s20, 1
    %p190 = por %p188, %p189
    %p191 = scmp.ne.s32.totalorder %s180, %s181
    %p192 = scmp.eq.s32.totalorder %s20, 0
    %p193 = por %p191, %p192
    %p194 = scmp.ne.s32.totalorder %s180, %s181
    %p195 = scmp.eq.s32.totalorder %s21, 1
    %p196 = por %p194, %p195
    %p198 = scmp.ne.s32.totalorder %s181, %s197
    %p199 = scmp.eq.s32.totalorder %s21, 0
    %p200 = por %p198, %p199
    %s201 = ssub.s32 %s15, %s22
    %p202 = scmp.eq.s32.totalorder %s201, 0
    %s204 = sadd.s32 %s203, 1
    %s205 = scalar_select %p202, %s203, %s204
    %p208 = pneg %p202
    %p209 = scmp.eq.s32.totalorder %s15, 1
    %p210 = por %p208, %p209
    %p211 = scmp.ne.s32.totalorder %s203, %s206
    %p212 = scmp.eq.s32.totalorder %s15, 0
    %p213 = por %p211, %p212
    %p214 = scmp.ne.s32.totalorder %s203, %s206
    %p215 = scmp.eq.s32.totalorder %s20, 1
    %p216 = por %p214, %p215
    %p217 = scmp.ne.s32.totalorder %s206, %s207
    %p218 = scmp.eq.s32.totalorder %s20, 0
    %p219 = por %p217, %p218
    %p220 = scmp.ne.s32.totalorder %s206, %s207
    %p221 = scmp.eq.s32.totalorder %s21, 1
    %p222 = por %p220, %p221
    %p224 = scmp.ne.s32.totalorder %s207, %s223
    %p225 = scmp.eq.s32.totalorder %s21, 0
    %p226 = por %p224, %p225
    %p227 = scmp.le.s32.totalorder 1, %s15
    %p228 = scmp.lt.s32.totalorder %s15, 3
    %p229 = pnand %p227, %p228
    %p230 = pneg %p229
    // Predicated region
    $region9: #{tpu_custom_call.1} parent=5 // pred_check
      _
    $region10: #{tpu_custom_call.1} parent=5 // pred_check_branch
      %232 = sbr.rel (%p229) target = $region12
    $region11: #{tpu_custom_call.1} parent=5 // pred_region
      %s233 = ssub.s32 %s15, 1
      // Predicated region
      $region13: #{tpu_custom_call.1} parent=11 // pred_check
        %p234 = pneg %p62
      $region14: #{tpu_custom_call.1} parent=11 // pred_check_branch
        %236 = sbr.rel (%p234) target = $region16
      $region15: #{tpu_custom_call.1} parent=11 // pred_region
        _
      $region16: #{tpu_custom_call.1} parent=11 // pred_fallthru
        _
      // Predicated region
      $region17: #{tpu_custom_call.1} parent=11 // pred_check
        %p237 = pneg %p83
      $region18: #{tpu_custom_call.1} parent=11 // pred_check_branch
        %239 = sbr.rel (%p237) target = $region20
      $region19: #{tpu_custom_call.1} parent=11 // pred_region
        _
      $region20: #{tpu_custom_call.1} parent=11 // pred_fallthru
        _
      // Predicated region
      $region21: #{tpu_custom_call.1} parent=11 // pred_check
        %p240 = pneg %p104
      $region22: #{tpu_custom_call.1} parent=11 // pred_check_branch
        %242 = sbr.rel (%p240) target = $region24
      $region23: #{tpu_custom_call.1} parent=11 // pred_region
        _
      $region24: #{tpu_custom_call.1} parent=11 // pred_fallthru
        _
      // Predicated region
      $region25: #{tpu_custom_call.1} parent=11 // pred_check
        %p243 = pneg %p125
      $region26: #{tpu_custom_call.1} parent=11 // pred_check_branch
        %245 = sbr.rel (%p243) target = $region28
      $region27: #{tpu_custom_call.1} parent=11 // pred_region
        _
      $region28: #{tpu_custom_call.1} parent=11 // pred_fallthru
        _
      // Predicated region
      $region29: #{tpu_custom_call.1} parent=11 // pred_check
        %p246 = pneg %p146
      $region30: #{tpu_custom_call.1} parent=11 // pred_check_branch
        %248 = sbr.rel (%p246) target = $region32
      $region31: #{tpu_custom_call.1} parent=11 // pred_region
        _
      $region32: #{tpu_custom_call.1} parent=11 // pred_fallthru
        _
      // Predicated region
      $region33: #{tpu_custom_call.1} parent=11 // pred_check
        %p249 = pneg %p167
      $region34: #{tpu_custom_call.1} parent=11 // pred_check_branch
        %251 = sbr.rel (%p249) target = $region36
      $region35: #{tpu_custom_call.1} parent=11 // pred_region
        _
      $region36: #{tpu_custom_call.1} parent=11 // pred_fallthru
        _
    $region12: #{tpu_custom_call.1} parent=5 // pred_fallthru
      _
    %p252 = scmp.lt.s32.totalorder %s15, 2
    // Predicated region
    $region37: #{tpu_custom_call.1} parent=5 // pred_check
      %p253 = pneg %p252
    $region38: #{tpu_custom_call.1} parent=5 // pred_check_branch
      %255 = sbr.rel (%p253) target = $region40
    $region39: #{tpu_custom_call.1} parent=5 // pred_region
      // Predicated region
      $region41: #{tpu_custom_call.1} parent=39 // pred_check
        %p256 = pneg %p35
      $region42: #{tpu_custom_call.1} parent=39 // pred_check_branch
        %258 = sbr.rel (%p256) target = $region44
      $region43: #{tpu_custom_call.1} parent=39 // pred_region
        %s259 = smul.u32 32, %s15
        %p260 = scmp.lt.s32.totalorder %s259, 63
        %s261 = scalar_select %p260, %s259, 63
        %s262 = smul.addr %s261, 8
        %s263 = scalar_lea.vmem %s0, %s262
        %s264 = smul.u32 32, %s15
      $region44: #{tpu_custom_call.1} parent=39 // pred_fallthru
        _
    $region40: #{tpu_custom_call.1} parent=5 // pred_fallthru
      _
    %p265 = scmp.le.s32.totalorder 1, %s15
    %p266 = scmp.lt.s32.totalorder %s15, 3
    %p267 = pnand %p265, %p266
    %p268 = pneg %p267
    // Predicated region
    $region45: #{tpu_custom_call.1} parent=5 // pred_check
      _
    $region46: #{tpu_custom_call.1} parent=5 // pred_check_branch
      %270 = sbr.rel (%p267) target = $region48
    $region47: #{tpu_custom_call.1} parent=5 // pred_region
      %s271 = ssub.s32 %s15, 1
      %s272 = smul.u32 32, %s20
      %p273 = scmp.lt.s32.totalorder %s272, 63
      %s274 = scalar_select %p273, %s272, 63
      %s275 = smul.addr %s274, 8
      %s276 = scalar_lea.vmem %s0, %s275
      %p277 = pneg %p41
      %p278 = pneg %p38
      %p279 = pneg %p62
      %p280 = pneg %p59
      %p281 = pneg %p83
      %p282 = pneg %p80
      %p283 = pneg %p104
      %p284 = pneg %p101
      %p285 = pneg %p125
      %p286 = pneg %p122
      %p287 = pneg %p146
      %p288 = pneg %p143
      %p289 = pneg %p167
      %p290 = pneg %p164
      %p291 = pneg %p193
      %p292 = pneg %p190
      %s293 = smul.u32 32, %s20
      %p294 = scmp.lt.s32.totalorder %s293, 63
      %s295 = scalar_select %p294, %s293, 63
      %s296 = smul.addr %s295, 8
      %s297 = scalar_lea.vmem %s7, %s296
      %p298 = pneg %p219
      %p299 = pneg %p216
      %s300 = smul.u32 32, %s20
      %p301 = scmp.lt.s32.totalorder %s300, 63
      %s302 = scalar_select %p301, %s300, 63
      %s303 = smul.addr %s302, 8
      %s304 = scalar_lea.vmem %s8, %s303
      %s305 = smul.u32 32, %s20
      %p306 = scmp.lt.s32.totalorder %s305, 63
      %s307 = scalar_select %p306, %s305, 63
      %s308 = smul.addr %s307, 8
      %s309 = scalar_lea.vmem %s0, %s308
      %s310 = smul.u32 32, %s20
      %s311 = smul.u32 32, %s20
      %p312 = scmp.lt.s32.totalorder %s311, 63
      %s313 = scalar_select %p312, %s311, 63
      %s314 = smul.addr %s313, 8
      %s315 = scalar_lea.vmem %s7, %s314
      %s316 = smul.u32 32, %s20
      %s317 = smul.u32 32, %s20
      %p318 = scmp.lt.s32.totalorder %s317, 63
      %s319 = scalar_select %p318, %s317, 63
      %s320 = smul.addr %s319, 8
      %s321 = scalar_lea.vmem %s8, %s320
      %s322 = smul.u32 32, %s20
      %v323 = vld [vmem:[%s309] sm:$0xff]
      %v324 = vld [vmem:[%s309 + $0x8] sm:$0xff]
      %v325 = vld [vmem:[%s309 + $0x10] sm:$0xff]
      %v326 = vld [vmem:[%s309 + $0x18] sm:$0xff]
      %v327 = vld [vmem:[%s309 + $0x20] sm:$0xff]
      %v328 = vld [vmem:[%s309 + $0x28] sm:$0xff]
      %v329 = vld [vmem:[%s309 + $0x30] sm:$0xff]
      %v330 = vld [vmem:[%s309 + $0x38] sm:$0xff]
      %v331 = vld [vmem:[%s309 + $0x40] sm:$0xff]
      %v332 = vld [vmem:[%s309 + $0x48] sm:$0xff]
      %v333 = vld [vmem:[%s309 + $0x50] sm:$0xff]
      %v334 = vld [vmem:[%s309 + $0x58] sm:$0xff]
      %v335 = vld [vmem:[%s309 + $0x60] sm:$0xff]
      %v336 = vld [vmem:[%s309 + $0x68] sm:$0xff]
      %v337 = vld [vmem:[%s309 + $0x70] sm:$0xff]
      %v338 = vld [vmem:[%s309 + $0x78] sm:$0xff]
      %v339 = vld [vmem:[%s309 + $0x80] sm:$0xff]
      %v340 = vld [vmem:[%s309 + $0x88] sm:$0xff]
      %v341 = vld [vmem:[%s309 + $0x90] sm:$0xff]
      %v342 = vld [vmem:[%s309 + $0x98] sm:$0xff]
      %v343 = vld [vmem:[%s309 + $0xa0] sm:$0xff]
      %v344 = vld [vmem:[%s309 + $0xa8] sm:$0xff]
      %v345 = vld [vmem:[%s309 + $0xb0] sm:$0xff]
      %v346 = vld [vmem:[%s309 + $0xb8] sm:$0xff]
      %v347 = vld [vmem:[%s309 + $0xc0] sm:$0xff]
      %v348 = vld [vmem:[%s309 + $0xc8] sm:$0xff]
      %v349 = vld [vmem:[%s309 + $0xd0] sm:$0xff]
      %v350 = vld [vmem:[%s309 + $0xd8] sm:$0xff]
      %v351 = vld [vmem:[%s309 + $0xe0] sm:$0xff]
      %v352 = vld [vmem:[%s309 + $0xe8] sm:$0xff]
      %v353 = vld [vmem:[%s309 + $0xf0] sm:$0xff]
      %v354 = vld [vmem:[%s309 + $0xf8] sm:$0xff]
      %v355 = vld [vmem:[%s1] sm:$0xff]
      %v356 = vld [vmem:[%s1 + $0x8] sm:$0xff]
      %v357 = vld [vmem:[%s1 + $0x10] sm:$0xff]
      %v358 = vld [vmem:[%s1 + $0x18] sm:$0xff]
      %v359 = vld [vmem:[%s2] sm:$0xf]
      %v360 = vld [vmem:[%s3] sm:$0x1]
      %v361 = vld [vmem:[%s4] sm:$0x1]
      %v362 = vld [vmem:[%s5] sm:$0x1]
      %v363 = vld [vmem:[%s6] sm:$0xf]
      %v365 = vlaneseq
      %v366 = vshrl.u32 %v365, 7
      %v367 = vsub.s32 0, %v366
      %v368 = vrot.slane %v360, %v367
      %vm370 = vcmask 261120
      %v372 = vsel %vm370, %v323, 0
      %v375 = vsel %vm370, %v324, 0
      %v378 = vsel %vm370, %v325, 0
      %v381 = vsel %vm370, %v326, 0
      %v384 = vsel %vm370, %v327, 0
      %v387 = vsel %vm370, %v328, 0
      %v390 = vsel %vm370, %v329, 0
      %v393 = vsel %vm370, %v330, 0
      %v396 = vsel %vm370, %v331, 0
      %v399 = vsel %vm370, %v332, 0
      %v402 = vsel %vm370, %v333, 0
      %v405 = vsel %vm370, %v334, 0
      %v408 = vsel %vm370, %v335, 0
      %v411 = vsel %vm370, %v336, 0
      %v414 = vsel %vm370, %v337, 0
      %v417 = vsel %vm370, %v338, 0
      %v420 = vsel %vm370, %v339, 0
      %v423 = vsel %vm370, %v340, 0
      %v426 = vsel %vm370, %v341, 0
      %v429 = vsel %vm370, %v342, 0
      %v432 = vsel %vm370, %v343, 0
      %v435 = vsel %vm370, %v344, 0
      %v438 = vsel %vm370, %v345, 0
      %v441 = vsel %vm370, %v346, 0
      %v444 = vsel %vm370, %v347, 0
      %v447 = vsel %vm370, %v348, 0
      %v450 = vsel %vm370, %v349, 0
      %v453 = vsel %vm370, %v350, 0
      %v456 = vsel %vm370, %v351, 0
      %v459 = vsel %vm370, %v352, 0
      %v462 = vsel %vm370, %v353, 0
      %v465 = vsel %vm370, %v354, 0
      %467 = vmatprep.subr.mxu0 0.0
      %468 = vmatpush1.msra.mxu0 %v355
      %469 = vmatprep.subr.mxu0 0.0
      %470 = vmatpush1.msra.mxu0 %v356
      %471 = vmatprep.subr.mxu0 0.0
      %472 = vmatpush1.msra.mxu0 %v357
      %473 = vmatprep.subr.mxu0 0.0
      %474 = vmatpush1.msra.mxu0 %v358
      %475 = vmatprep.subr.mxu0 0.0
      %476 = vmatpush1.msra.mxu0 0.0
      %477 = vmatprep.subr.mxu0 0.0
      %478 = vmatpush1.msra.mxu0 0.0
      %479 = vmatprep.subr.mxu0 0.0
      %480 = vmatpush1.msra.mxu0 0.0
      %481 = vmatprep.subr.mxu0 0.0
      %482 = vmatpush1.msra.mxu0 0.0
      %483 = vmatprep.subr.mxu0 0.0
      %484 = vmatpush1.msra.mxu0 0.0
      %485 = vmatprep.subr.mxu0 0.0
      %486 = vmatpush1.msra.mxu0 0.0
      %487 = vmatprep.subr.mxu0 0.0
      %488 = vmatpush1.msra.mxu0 0.0
      %489 = vmatprep.subr.mxu0 0.0
      %490 = vmatpush1.msra.mxu0 0.0
      %491 = vmatprep.subr.mxu0 0.0
      %492 = vmatpush1.msra.mxu0 0.0
      %493 = vmatprep.subr.mxu0 0.0
      %494 = vmatpush1.msra.mxu0 0.0
      %495 = vmatprep.subr.mxu0 0.0
      %496 = vmatpush1.msra.mxu0 0.0
      %497 = vmatprep.subr.mxu0 0.0
      %498 = vmatpush1.msra.mxu0 0.0
      %499 = vmatprep.subr.mxu0 0.0
      %500 = vmatpush1.msra.mxu0 0.0
      %501 = vmatprep.subr.mxu0 0.0
      %502 = vmatpush1.msra.mxu0 0.0
      %503 = vmatprep.subr.mxu0 0.0
      %504 = vmatpush1.msra.mxu0 0.0
      %505 = vmatprep.subr.mxu0 0.0
      %506 = vmatpush1.msra.mxu0 0.0
      %507 = vmatprep.subr.mxu0 0.0
      %508 = vmatpush1.msra.mxu0 0.0
      %509 = vmatprep.subr.mxu0 0.0
      %510 = vmatpush1.msra.mxu0 0.0
      %511 = vmatprep.subr.mxu0 0.0
      %512 = vmatpush1.msra.mxu0 0.0
      %513 = vmatprep.subr.mxu0 0.0
      %514 = vmatpush1.msra.mxu0 0.0
      %515 = vmatprep.subr.mxu0 0.0
      %516 = vmatpush1.msra.mxu0 0.0
      %517 = vmatprep.subr.mxu0 0.0
      %518 = vmatpush1.msra.mxu0 0.0
      %519 = vmatprep.subr.mxu0 0.0
      %520 = vmatpush1.msra.mxu0 0.0
      %521 = vmatprep.subr.mxu0 0.0
      %522 = vmatpush1.msra.mxu0 0.0
      %523 = vmatprep.subr.mxu0 0.0
      %524 = vmatpush1.msra.mxu0 0.0
      %525 = vmatprep.subr.mxu0 0.0
      %526 = vmatpush1.msra.mxu0 0.0
      %527 = vmatprep.subr.mxu0 0.0
      %528 = vmatpush1.msra.mxu0 0.0
      %529 = vmatprep.subr.mxu0 0.0
      %530 = vmatpush1.msra.mxu0 0.0
      %531 = vmatprep.mubr.f32.mxu0 0.0
      %532 = vmatmul.mubr.f32.gmra.mrb[0].mxu0 %v372
      %v533 = vpop.f32.mrb[0].mxu0
      %v534 = vadd.f32 %v368, %v533
      %v535 = vpop.f32.mrb[0].mxu0
      %536 = vmatprep.mubr.f32.mxu0 0.0
      %537 = vmatmul.mubr.f32.gmra.mrb[0].mxu0 %v375
      %v538 = vpop.f32.mrb[0].mxu0
      %v539 = vadd.f32 %v368, %v538
      %v540 = vpop.f32.mrb[0].mxu0
      %541 = vmatprep.mubr.f32.mxu0 0.0
      %542 = vmatmul.mubr.f32.gmra.mrb[0].mxu0 %v378
      %v543 = vpop.f32.mrb[0].mxu0
      %v544 = vadd.f32 %v368, %v543
      %v545 = vpop.f32.mrb[0].mxu0
      %546 = vmatprep.mubr.f32.mxu0 0.0
      %547 = vmatmul.mubr.f32.gmra.mrb[0].mxu0 %v381
      %v548 = vpop.f32.mrb[0].mxu0
      %v549 = vadd.f32 %v368, %v548
      %v550 = vpop.f32.mrb[0].mxu0
      %551 = vmatprep.mubr.f32.mxu0 0.0
      %552 = vmatmul.mubr.f32.gmra.mrb[0].mxu0 %v384
      %v553 = vpop.f32.mrb[0].mxu0
      %v554 = vadd.f32 %v368, %v553
      %v555 = vpop.f32.mrb[0].mxu0
      %556 = vmatprep.mubr.f32.mxu0 0.0
      %557 = vmatmul.mubr.f32.gmra.mrb[0].mxu0 %v387
      %v558 = vpop.f32.mrb[0].mxu0
      %v559 = vadd.f32 %v368, %v558
      %v560 = vpop.f32.mrb[0].mxu0
      %561 = vmatprep.mubr.f32.mxu0 0.0
      %562 = vmatmul.mubr.f32.gmra.mrb[0].mxu0 %v390
      %v563 = vpop.f32.mrb[0].mxu0
      %v564 = vadd.f32 %v368, %v563
      %v565 = vpop.f32.mrb[0].mxu0
      %566 = vmatprep.mubr.f32.mxu0 0.0
      %567 = vmatmul.mubr.f32.gmra.mrb[0].mxu0 %v393
      %v568 = vpop.f32.mrb[0].mxu0
      %v569 = vadd.f32 %v368, %v568
      %v570 = vpop.f32.mrb[0].mxu0
      %571 = vmatprep.mubr.f32.mxu0 0.0
      %572 = vmatmul.mubr.f32.gmra.mrb[0].mxu0 %v396
      %v573 = vpop.f32.mrb[0].mxu0
      %v574 = vadd.f32 %v368, %v573
      %v575 = vpop.f32.mrb[0].mxu0
      %576 = vmatprep.mubr.f32.mxu0 0.0
      %577 = vmatmul.mubr.f32.gmra.mrb[0].mxu0 %v399
      %v578 = vpop.f32.mrb[0].mxu0
      %v579 = vadd.f32 %v368, %v578
      %v580 = vpop.f32.mrb[0].mxu0
      %581 = vmatprep.mubr.f32.mxu0 0.0
      %582 = vmatmul.mubr.f32.gmra.mrb[0].mxu0 %v402
      %v583 = vpop.f32.mrb[0].mxu0
      %v584 = vadd.f32 %v368, %v583
      %v585 = vpop.f32.mrb[0].mxu0
      %586 = vmatprep.mubr.f32.mxu0 0.0
      %587 = vmatmul.mubr.f32.gmra.mrb[0].mxu0 %v405
      %v588 = vpop.f32.mrb[0].mxu0
      %v589 = vadd.f32 %v368, %v588
      %v590 = vpop.f32.mrb[0].mxu0
      %591 = vmatprep.mubr.f32.mxu0 0.0
      %592 = vmatmul.mubr.f32.gmra.mrb[0].mxu0 %v408
      %v593 = vpop.f32.mrb[0].mxu0
      %v594 = vadd.f32 %v368, %v593
      %v595 = vpop.f32.mrb[0].mxu0
      %596 = vmatprep.mubr.f32.mxu0 0.0
      %597 = vmatmul.mubr.f32.gmra.mrb[0].mxu0 %v411
      %v598 = vpop.f32.mrb[0].mxu0
      %v599 = vadd.f32 %v368, %v598
      %v600 = vpop.f32.mrb[0].mxu0
      %601 = vmatprep.mubr.f32.mxu0 0.0
      %602 = vmatmul.mubr.f32.gmra.mrb[0].mxu0 %v414
      %v603 = vpop.f32.mrb[0].mxu0
      %v604 = vadd.f32 %v368, %v603
      %v605 = vpop.f32.mrb[0].mxu0
      %606 = vmatprep.mubr.f32.mxu0 0.0
      %607 = vmatmul.mubr.f32.gmra.mrb[0].mxu0 %v417
      %v608 = vpop.f32.mrb[0].mxu0
      %v609 = vadd.f32 %v368, %v608
      %v610 = vpop.f32.mrb[0].mxu0
      %611 = vmatprep.mubr.f32.mxu0 0.0
      %612 = vmatmul.mubr.f32.gmra.mrb[0].mxu0 %v420
      %v613 = vpop.f32.mrb[0].mxu0
      %v614 = vadd.f32 %v368, %v613
      %v615 = vpop.f32.mrb[0].mxu0
      %616 = vmatprep.mubr.f32.mxu0 0.0
      %617 = vmatmul.mubr.f32.gmra.mrb[0].mxu0 %v423
      %v618 = vpop.f32.mrb[0].mxu0
      %v619 = vadd.f32 %v368, %v618
      %v620 = vpop.f32.mrb[0].mxu0
      %621 = vmatprep.mubr.f32.mxu0 0.0
      %622 = vmatmul.mubr.f32.gmra.mrb[0].mxu0 %v426
      %v623 = vpop.f32.mrb[0].mxu0
      %v624 = vadd.f32 %v368, %v623
      %v625 = vpop.f32.mrb[0].mxu0
      %626 = vmatprep.mubr.f32.mxu0 0.0
      %627 = vmatmul.mubr.f32.gmra.mrb[0].mxu0 %v429
      %v628 = vpop.f32.mrb[0].mxu0
      %v629 = vadd.f32 %v368, %v628
      %v630 = vpop.f32.mrb[0].mxu0
      %631 = vmatprep.mubr.f32.mxu0 0.0
      %632 = vmatmul.mubr.f32.gmra.mrb[0].mxu0 %v432
      %v633 = vpop.f32.mrb[0].mxu0
      %v634 = vadd.f32 %v368, %v633
      %v635 = vpop.f32.mrb[0].mxu0
      %636 = vmatprep.mubr.f32.mxu0 0.0
      %637 = vmatmul.mubr.f32.gmra.mrb[0].mxu0 %v435
      %v638 = vpop.f32.mrb[0].mxu0
      %v639 = vadd.f32 %v368, %v638
      %v640 = vpop.f32.mrb[0].mxu0
      %641 = vmatprep.mubr.f32.mxu0 0.0
      %642 = vmatmul.mubr.f32.gmra.mrb[0].mxu0 %v438
      %v643 = vpop.f32.mrb[0].mxu0
      %v644 = vadd.f32 %v368, %v643
      %v645 = vpop.f32.mrb[0].mxu0
      %646 = vmatprep.mubr.f32.mxu0 0.0
      %647 = vmatmul.mubr.f32.gmra.mrb[0].mxu0 %v441
      %v648 = vpop.f32.mrb[0].mxu0
      %v649 = vadd.f32 %v368, %v648
      %v650 = vpop.f32.mrb[0].mxu0
      %651 = vmatprep.mubr.f32.mxu0 0.0
      %652 = vmatmul.mubr.f32.gmra.mrb[0].mxu0 %v444
      %v653 = vpop.f32.mrb[0].mxu0
      %v654 = vadd.f32 %v368, %v653
      %v655 = vpop.f32.mrb[0].mxu0
      %656 = vmatprep.mubr.f32.mxu0 0.0
      %657 = vmatmul.mubr.f32.gmra.mrb[0].mxu0 %v447
      %v658 = vpop.f32.mrb[0].mxu0
      %v659 = vadd.f32 %v368, %v658
      %v660 = vpop.f32.mrb[0].mxu0
      %661 = vmatprep.mubr.f32.mxu0 0.0
      %662 = vmatmul.mubr.f32.gmra.mrb[0].mxu0 %v450
      %v663 = vpop.f32.mrb[0].mxu0
      %v664 = vadd.f32 %v368, %v663
      %v665 = vpop.f32.mrb[0].mxu0
      %666 = vmatprep.mubr.f32.mxu0 0.0
      %667 = vmatmul.mubr.f32.gmra.mrb[0].mxu0 %v453
      %v668 = vpop.f32.mrb[0].mxu0
      %v669 = vadd.f32 %v368, %v668
      %v670 = vpop.f32.mrb[0].mxu0
      %671 = vmatprep.mubr.f32.mxu0 0.0
      %672 = vmatmul.mubr.f32.gmra.mrb[0].mxu0 %v456
      %v673 = vpop.f32.mrb[0].mxu0
      %v674 = vadd.f32 %v368, %v673
      %v675 = vpop.f32.mrb[0].mxu0
      %676 = vmatprep.mubr.f32.mxu0 0.0
      %677 = vmatmul.mubr.f32.gmra.mrb[0].mxu0 %v459
      %v678 = vpop.f32.mrb[0].mxu0
      %v679 = vadd.f32 %v368, %v678
      %v680 = vpop.f32.mrb[0].mxu0
      %681 = vmatprep.mubr.f32.mxu0 0.0
      %682 = vmatmul.mubr.f32.gmra.mrb[0].mxu0 %v462
      %v683 = vpop.f32.mrb[0].mxu0
      %v684 = vadd.f32 %v368, %v683
      %v685 = vpop.f32.mrb[0].mxu0
      %686 = vmatprep.mubr.f32.mxu0 0.0
      %687 = vmatmul.mubr.f32.gmra.mrb[0].mxu0 %v465
      %v688 = vpop.f32.mrb[0].mxu0
      %v689 = vadd.f32 %v368, %v688
      %v690 = vpop.f32.mrb[0].mxu0
      %691 = vdwg.mxu0
      %v692 = vtanh.pop %v534
      %v693 = vtanh.pop %v539
      %v694 = vtanh.pop %v544
      %v695 = vtanh.pop %v549
      %v696 = vtanh.pop %v554
      %v697 = vtanh.pop %v559
      %v698 = vtanh.pop %v564
      %v699 = vtanh.pop %v569
      %v700 = vtanh.pop %v574
      %v701 = vtanh.pop %v579
      %v702 = vtanh.pop %v584
      %v703 = vtanh.pop %v589
      %v704 = vtanh.pop %v594
      %v705 = vtanh.pop %v599
      %v706 = vtanh.pop %v604
      %v707 = vtanh.pop %v609
      %v708 = vtanh.pop %v614
      %v709 = vtanh.pop %v619
      %v710 = vtanh.pop %v624
      %v711 = vtanh.pop %v629
      %v712 = vtanh.pop %v634
      %v713 = vtanh.pop %v639
      %v714 = vtanh.pop %v644
      %v715 = vtanh.pop %v649
      %v716 = vtanh.pop %v654
      %v717 = vtanh.pop %v659
      %v718 = vtanh.pop %v664
      %v719 = vtanh.pop %v669
      %v720 = vtanh.pop %v674
      %v721 = vtanh.pop %v679
      %v722 = vtanh.pop %v684
      %v723 = vtanh.pop %v689
      %725 = vset.pattern.permute.xlu0 0
      %726 = vperm.xlu0 %725, %v692
      %v727 = vpop.permute.xlu0 %726
      %730 = vset.pattern.permute.xlu0 0
      %731 = vperm.xlu0 %730, %v693
      %v732 = vpop.permute.xlu0 %731
      %735 = vset.pattern.permute.xlu0 0
      %736 = vperm.xlu0 %735, %v694
      %v737 = vpop.permute.xlu0 %736
      %740 = vset.pattern.permute.xlu0 0
      %741 = vperm.xlu0 %740, %v695
      %v742 = vpop.permute.xlu0 %741
      %745 = vset.pattern.permute.xlu0 0
      %746 = vperm.xlu0 %745, %v696
      %v747 = vpop.permute.xlu0 %746
      %750 = vset.pattern.permute.xlu0 0
      %751 = vperm.xlu0 %750, %v697
      %v752 = vpop.permute.xlu0 %751
      %755 = vset.pattern.permute.xlu0 0
      %756 = vperm.xlu0 %755, %v698
      %v757 = vpop.permute.xlu0 %756
      %760 = vset.pattern.permute.xlu0 0
      %761 = vperm.xlu0 %760, %v699
      %v762 = vpop.permute.xlu0 %761
      %765 = vset.pattern.permute.xlu0 0
      %766 = vperm.xlu0 %765, %v700
      %v767 = vpop.permute.xlu0 %766
      %770 = vset.pattern.permute.xlu0 0
      %771 = vperm.xlu0 %770, %v701
      %v772 = vpop.permute.xlu0 %771
      %775 = vset.pattern.permute.xlu0 0
      %776 = vperm.xlu0 %775, %v702
      %v777 = vpop.permute.xlu0 %776
      %780 = vset.pattern.permute.xlu0 0
      %781 = vperm.xlu0 %780, %v703
      %v782 = vpop.permute.xlu0 %781
      %785 = vset.pattern.permute.xlu0 0
      %786 = vperm.xlu0 %785, %v704
      %v787 = vpop.permute.xlu0 %786
      %790 = vset.pattern.permute.xlu0 0
      %791 = vperm.xlu0 %790, %v705
      %v792 = vpop.permute.xlu0 %791
      %795 = vset.pattern.permute.xlu0 0
      %796 = vperm.xlu0 %795, %v706
      %v797 = vpop.permute.xlu0 %796
      %800 = vset.pattern.permute.xlu0 0
      %801 = vperm.xlu0 %800, %v707
      %v802 = vpop.permute.xlu0 %801
      %805 = vset.pattern.permute.xlu0 0
      %806 = vperm.xlu0 %805, %v708
      %v807 = vpop.permute.xlu0 %806
      %810 = vset.pattern.permute.xlu0 0
      %811 = vperm.xlu0 %810, %v709
      %v812 = vpop.permute.xlu0 %811
      %815 = vset.pattern.permute.xlu0 0
      %816 = vperm.xlu0 %815, %v710
      %v817 = vpop.permute.xlu0 %816
      %820 = vset.pattern.permute.xlu0 0
      %821 = vperm.xlu0 %820, %v711
      %v822 = vpop.permute.xlu0 %821
      %825 = vset.pattern.permute.xlu0 0
      %826 = vperm.xlu0 %825, %v712
      %v827 = vpop.permute.xlu0 %826
      %830 = vset.pattern.permute.xlu0 0
      %831 = vperm.xlu0 %830, %v713
      %v832 = vpop.permute.xlu0 %831
      %835 = vset.pattern.permute.xlu0 0
      %836 = vperm.xlu0 %835, %v714
      %v837 = vpop.permute.xlu0 %836
      %840 = vset.pattern.permute.xlu0 0
      %841 = vperm.xlu0 %840, %v715
      %v842 = vpop.permute.xlu0 %841
      %845 = vset.pattern.permute.xlu0 0
      %846 = vperm.xlu0 %845, %v716
      %v847 = vpop.permute.xlu0 %846
      %850 = vset.pattern.permute.xlu0 0
      %851 = vperm.xlu0 %850, %v717
      %v852 = vpop.permute.xlu0 %851
      %855 = vset.pattern.permute.xlu0 0
      %856 = vperm.xlu0 %855, %v718
      %v857 = vpop.permute.xlu0 %856
      %860 = vset.pattern.permute.xlu0 0
      %861 = vperm.xlu0 %860, %v719
      %v862 = vpop.permute.xlu0 %861
      %865 = vset.pattern.permute.xlu0 0
      %866 = vperm.xlu0 %865, %v720
      %v867 = vpop.permute.xlu0 %866
      %870 = vset.pattern.permute.xlu0 0
      %871 = vperm.xlu0 %870, %v721
      %v872 = vpop.permute.xlu0 %871
      %875 = vset.pattern.permute.xlu0 0
      %876 = vperm.xlu0 %875, %v722
      %v877 = vpop.permute.xlu0 %876
      %880 = vset.pattern.permute.xlu0 0
      %881 = vperm.xlu0 %880, %v723
      %v882 = vpop.permute.xlu0 %881
      %v884 = vlaneseq
      %v885 = vshrl.u32 %v884, 7
      %v886 = vsub.s32 0, %v885
      %v887 = vrot.slane %v363, %v886
      %v888 = vmul.f32 %v727, %v887
      %v889 = vmul.f32 %v732, %v887
      %v890 = vmul.f32 %v737, %v887
      %v891 = vmul.f32 %v742, %v887
      %v892 = vmul.f32 %v747, %v887
      %v893 = vmul.f32 %v752, %v887
      %v894 = vmul.f32 %v757, %v887
      %v895 = vmul.f32 %v762, %v887
      %v896 = vmul.f32 %v767, %v887
      %v897 = vmul.f32 %v772, %v887
      %v898 = vmul.f32 %v777, %v887
      %v899 = vmul.f32 %v782, %v887
      %v900 = vmul.f32 %v787, %v887
      %v901 = vmul.f32 %v792, %v887
      %v902 = vmul.f32 %v797, %v887
      %v903 = vmul.f32 %v802, %v887
      %v904 = vmul.f32 %v807, %v887
      %v905 = vmul.f32 %v812, %v887
      %v906 = vmul.f32 %v817, %v887
      %v907 = vmul.f32 %v822, %v887
      %v908 = vmul.f32 %v827, %v887
      %v909 = vmul.f32 %v832, %v887
      %v910 = vmul.f32 %v837, %v887
      %v911 = vmul.f32 %v842, %v887
      %v912 = vmul.f32 %v847, %v887
      %v913 = vmul.f32 %v852, %v887
      %v914 = vmul.f32 %v857, %v887
      %v915 = vmul.f32 %v862, %v887
      %v916 = vmul.f32 %v867, %v887
      %v917 = vmul.f32 %v872, %v887
      %v918 = vmul.f32 %v877, %v887
      %v919 = vmul.f32 %v882, %v887
      %v920 = vadd.f32 %v534, %v888
      %v921 = vadd.f32 %v539, %v889
      %v922 = vadd.f32 %v544, %v890
      %v923 = vadd.f32 %v549, %v891
      %v924 = vadd.f32 %v554, %v892
      %v925 = vadd.f32 %v559, %v893
      %v926 = vadd.f32 %v564, %v894
      %v927 = vadd.f32 %v569, %v895
      %v928 = vadd.f32 %v574, %v896
      %v929 = vadd.f32 %v579, %v897
      %v930 = vadd.f32 %v584, %v898
      %v931 = vadd.f32 %v589, %v899
      %v932 = vadd.f32 %v594, %v900
      %v933 = vadd.f32 %v599, %v901
      %v934 = vadd.f32 %v604, %v902
      %v935 = vadd.f32 %v609, %v903
      %v936 = vadd.f32 %v614, %v904
      %v937 = vadd.f32 %v619, %v905
      %v938 = vadd.f32 %v624, %v906
      %v939 = vadd.f32 %v629, %v907
      %v940 = vadd.f32 %v634, %v908
      %v941 = vadd.f32 %v639, %v909
      %v942 = vadd.f32 %v644, %v910
      %v943 = vadd.f32 %v649, %v911
      %v944 = vadd.f32 %v654, %v912
      %v945 = vadd.f32 %v659, %v913
      %v946 = vadd.f32 %v664, %v914
      %v947 = vadd.f32 %v669, %v915
      %v948 = vadd.f32 %v674, %v916
      %v949 = vadd.f32 %v679, %v917
      %v950 = vadd.f32 %v684, %v918
      %v951 = vadd.f32 %v689, %v919
      %v952 = vtanh.pop %v920
      %v953 = vtanh.pop %v921
      %v954 = vtanh.pop %v922
      %v955 = vtanh.pop %v923
      %v956 = vtanh.pop %v924
      %v957 = vtanh.pop %v925
      %v958 = vtanh.pop %v926
      %v959 = vtanh.pop %v927
      %v960 = vtanh.pop %v928
      %v961 = vtanh.pop %v929
      %v962 = vtanh.pop %v930
      %v963 = vtanh.pop %v931
      %v964 = vtanh.pop %v932
      %v965 = vtanh.pop %v933
      %v966 = vtanh.pop %v934
      %v967 = vtanh.pop %v935
      %v968 = vtanh.pop %v936
      %v969 = vtanh.pop %v937
      %v970 = vtanh.pop %v938
      %v971 = vtanh.pop %v939
      %v972 = vtanh.pop %v940
      %v973 = vtanh.pop %v941
      %v974 = vtanh.pop %v942
      %v975 = vtanh.pop %v943
      %v976 = vtanh.pop %v944
      %v977 = vtanh.pop %v945
      %v978 = vtanh.pop %v946
      %v979 = vtanh.pop %v947
      %v980 = vtanh.pop %v948
      %v981 = vtanh.pop %v949
      %v982 = vtanh.pop %v950
      %v983 = vtanh.pop %v951
      %985 = vset.pattern.permute.xlu0 1
      %986 = vperm.xlu0 %985, %v952
      %v987 = vpop.permute.xlu0 %986
      %990 = vset.pattern.permute.xlu0 1
      %991 = vperm.xlu0 %990, %v953
      %v992 = vpop.permute.xlu0 %991
      %995 = vset.pattern.permute.xlu0 1
      %996 = vperm.xlu0 %995, %v954
      %v997 = vpop.permute.xlu0 %996
      %1000 = vset.pattern.permute.xlu0 1
      %1001 = vperm.xlu0 %1000, %v955
      %v1002 = vpop.permute.xlu0 %1001
      %1005 = vset.pattern.permute.xlu0 1
      %1006 = vperm.xlu0 %1005, %v956
      %v1007 = vpop.permute.xlu0 %1006
      %1010 = vset.pattern.permute.xlu0 1
      %1011 = vperm.xlu0 %1010, %v957
      %v1012 = vpop.permute.xlu0 %1011
      %1015 = vset.pattern.permute.xlu0 1
      %1016 = vperm.xlu0 %1015, %v958
      %v1017 = vpop.permute.xlu0 %1016
      %1020 = vset.pattern.permute.xlu0 1
      %1021 = vperm.xlu0 %1020, %v959
      %v1022 = vpop.permute.xlu0 %1021
      %1025 = vset.pattern.permute.xlu0 1
      %1026 = vperm.xlu0 %1025, %v960
      %v1027 = vpop.permute.xlu0 %1026
      %1030 = vset.pattern.permute.xlu0 1
      %1031 = vperm.xlu0 %1030, %v961
      %v1032 = vpop.permute.xlu0 %1031
      %1035 = vset.pattern.permute.xlu0 1
      %1036 = vperm.xlu0 %1035, %v962
      %v1037 = vpop.permute.xlu0 %1036
      %1040 = vset.pattern.permute.xlu0 1
      %1041 = vperm.xlu0 %1040, %v963
      %v1042 = vpop.permute.xlu0 %1041
      %1045 = vset.pattern.permute.xlu0 1
      %1046 = vperm.xlu0 %1045, %v964
      %v1047 = vpop.permute.xlu0 %1046
      %1050 = vset.pattern.permute.xlu0 1
      %1051 = vperm.xlu0 %1050, %v965
      %v1052 = vpop.permute.xlu0 %1051
      %1055 = vset.pattern.permute.xlu0 1
      %1056 = vperm.xlu0 %1055, %v966
      %v1057 = vpop.permute.xlu0 %1056
      %1060 = vset.pattern.permute.xlu0 1
      %1061 = vperm.xlu0 %1060, %v967
      %v1062 = vpop.permute.xlu0 %1061
      %1065 = vset.pattern.permute.xlu0 1
      %1066 = vperm.xlu0 %1065, %v968
      %v1067 = vpop.permute.xlu0 %1066
      %1070 = vset.pattern.permute.xlu0 1
      %1071 = vperm.xlu0 %1070, %v969
      %v1072 = vpop.permute.xlu0 %1071
      %1075 = vset.pattern.permute.xlu0 1
      %1076 = vperm.xlu0 %1075, %v970
      %v1077 = vpop.permute.xlu0 %1076
      %1080 = vset.pattern.permute.xlu0 1
      %1081 = vperm.xlu0 %1080, %v971
      %v1082 = vpop.permute.xlu0 %1081
      %1085 = vset.pattern.permute.xlu0 1
      %1086 = vperm.xlu0 %1085, %v972
      %v1087 = vpop.permute.xlu0 %1086
      %1090 = vset.pattern.permute.xlu0 1
      %1091 = vperm.xlu0 %1090, %v973
      %v1092 = vpop.permute.xlu0 %1091
      %1095 = vset.pattern.permute.xlu0 1
      %1096 = vperm.xlu0 %1095, %v974
      %v1097 = vpop.permute.xlu0 %1096
      %1100 = vset.pattern.permute.xlu0 1
      %1101 = vperm.xlu0 %1100, %v975
      %v1102 = vpop.permute.xlu0 %1101
      %1105 = vset.pattern.permute.xlu0 1
      %1106 = vperm.xlu0 %1105, %v976
      %v1107 = vpop.permute.xlu0 %1106
      %1110 = vset.pattern.permute.xlu0 1
      %1111 = vperm.xlu0 %1110, %v977
      %v1112 = vpop.permute.xlu0 %1111
      %1115 = vset.pattern.permute.xlu0 1
      %1116 = vperm.xlu0 %1115, %v978
      %v1117 = vpop.permute.xlu0 %1116
      %1120 = vset.pattern.permute.xlu0 1
      %1121 = vperm.xlu0 %1120, %v979
      %v1122 = vpop.permute.xlu0 %1121
      %1125 = vset.pattern.permute.xlu0 1
      %1126 = vperm.xlu0 %1125, %v980
      %v1127 = vpop.permute.xlu0 %1126
      %1130 = vset.pattern.permute.xlu0 1
      %1131 = vperm.xlu0 %1130, %v981
      %v1132 = vpop.permute.xlu0 %1131
      %1135 = vset.pattern.permute.xlu0 1
      %1136 = vperm.xlu0 %1135, %v982
      %v1137 = vpop.permute.xlu0 %1136
      %1140 = vset.pattern.permute.xlu0 1
      %1141 = vperm.xlu0 %1140, %v983
      %v1142 = vpop.permute.xlu0 %1141
      %v1144 = vlaneseq
      %v1145 = vshrl.u32 %v1144, 7
      %v1146 = vsub.s32 1, %v1145
      %v1147 = vrot.slane %v363, %v1146
      %v1148 = vmul.f32 %v987, %v1147
      %v1149 = vmul.f32 %v992, %v1147
      %v1150 = vmul.f32 %v997, %v1147
      %v1151 = vmul.f32 %v1002, %v1147
      %v1152 = vmul.f32 %v1007, %v1147
      %v1153 = vmul.f32 %v1012, %v1147
      %v1154 = vmul.f32 %v1017, %v1147
      %v1155 = vmul.f32 %v1022, %v1147
      %v1156 = vmul.f32 %v1027, %v1147
      %v1157 = vmul.f32 %v1032, %v1147
      %v1158 = vmul.f32 %v1037, %v1147
      %v1159 = vmul.f32 %v1042, %v1147
      %v1160 = vmul.f32 %v1047, %v1147
      %v1161 = vmul.f32 %v1052, %v1147
      %v1162 = vmul.f32 %v1057, %v1147
      %v1163 = vmul.f32 %v1062, %v1147
      %v1164 = vmul.f32 %v1067, %v1147
      %v1165 = vmul.f32 %v1072, %v1147
      %v1166 = vmul.f32 %v1077, %v1147
      %v1167 = vmul.f32 %v1082, %v1147
      %v1168 = vmul.f32 %v1087, %v1147
      %v1169 = vmul.f32 %v1092, %v1147
      %v1170 = vmul.f32 %v1097, %v1147
      %v1171 = vmul.f32 %v1102, %v1147
      %v1172 = vmul.f32 %v1107, %v1147
      %v1173 = vmul.f32 %v1112, %v1147
      %v1174 = vmul.f32 %v1117, %v1147
      %v1175 = vmul.f32 %v1122, %v1147
      %v1176 = vmul.f32 %v1127, %v1147
      %v1177 = vmul.f32 %v1132, %v1147
      %v1178 = vmul.f32 %v1137, %v1147
      %v1179 = vmul.f32 %v1142, %v1147
      %v1180 = vadd.f32 %v920, %v1148
      %v1181 = vadd.f32 %v921, %v1149
      %v1182 = vadd.f32 %v922, %v1150
      %v1183 = vadd.f32 %v923, %v1151
      %v1184 = vadd.f32 %v924, %v1152
      %v1185 = vadd.f32 %v925, %v1153
      %v1186 = vadd.f32 %v926, %v1154
      %v1187 = vadd.f32 %v927, %v1155
      %v1188 = vadd.f32 %v928, %v1156
      %v1189 = vadd.f32 %v929, %v1157
      %v1190 = vadd.f32 %v930, %v1158
      %v1191 = vadd.f32 %v931, %v1159
      %v1192 = vadd.f32 %v932, %v1160
      %v1193 = vadd.f32 %v933, %v1161
      %v1194 = vadd.f32 %v934, %v1162
      %v1195 = vadd.f32 %v935, %v1163
      %v1196 = vadd.f32 %v936, %v1164
      %v1197 = vadd.f32 %v937, %v1165
      %v1198 = vadd.f32 %v938, %v1166
      %v1199 = vadd.f32 %v939, %v1167
      %v1200 = vadd.f32 %v940, %v1168
      %v1201 = vadd.f32 %v941, %v1169
      %v1202 = vadd.f32 %v942, %v1170
      %v1203 = vadd.f32 %v943, %v1171
      %v1204 = vadd.f32 %v944, %v1172
      %v1205 = vadd.f32 %v945, %v1173
      %v1206 = vadd.f32 %v946, %v1174
      %v1207 = vadd.f32 %v947, %v1175
      %v1208 = vadd.f32 %v948, %v1176
      %v1209 = vadd.f32 %v949, %v1177
      %v1210 = vadd.f32 %v950, %v1178
      %v1211 = vadd.f32 %v951, %v1179
      %v1212 = vtanh.pop %v1180
      %v1213 = vtanh.pop %v1181
      %v1214 = vtanh.pop %v1182
      %v1215 = vtanh.pop %v1183
      %v1216 = vtanh.pop %v1184
      %v1217 = vtanh.pop %v1185
      %v1218 = vtanh.pop %v1186
      %v1219 = vtanh.pop %v1187
      %v1220 = vtanh.pop %v1188
      %v1221 = vtanh.pop %v1189
      %v1222 = vtanh.pop %v1190
      %v1223 = vtanh.pop %v1191
      %v1224 = vtanh.pop %v1192
      %v1225 = vtanh.pop %v1193
      %v1226 = vtanh.pop %v1194
      %v1227 = vtanh.pop %v1195
      %v1228 = vtanh.pop %v1196
      %v1229 = vtanh.pop %v1197
      %v1230 = vtanh.pop %v1198
      %v1231 = vtanh.pop %v1199
      %v1232 = vtanh.pop %v1200
      %v1233 = vtanh.pop %v1201
      %v1234 = vtanh.pop %v1202
      %v1235 = vtanh.pop %v1203
      %v1236 = vtanh.pop %v1204
      %v1237 = vtanh.pop %v1205
      %v1238 = vtanh.pop %v1206
      %v1239 = vtanh.pop %v1207
      %v1240 = vtanh.pop %v1208
      %v1241 = vtanh.pop %v1209
      %v1242 = vtanh.pop %v1210
      %v1243 = vtanh.pop %v1211
      %1245 = vset.pattern.permute.xlu0 2
      %1246 = vperm.xlu0 %1245, %v1212
      %v1247 = vpop.permute.xlu0 %1246
      %1250 = vset.pattern.permute.xlu0 2
      %1251 = vperm.xlu0 %1250, %v1213
      %v1252 = vpop.permute.xlu0 %1251
      %1255 = vset.pattern.permute.xlu0 2
      %1256 = vperm.xlu0 %1255, %v1214
      %v1257 = vpop.permute.xlu0 %1256
      %1260 = vset.pattern.permute.xlu0 2
      %1261 = vperm.xlu0 %1260, %v1215
      %v1262 = vpop.permute.xlu0 %1261
      %1265 = vset.pattern.permute.xlu0 2
      %1266 = vperm.xlu0 %1265, %v1216
      %v1267 = vpop.permute.xlu0 %1266
      %1270 = vset.pattern.permute.xlu0 2
      %1271 = vperm.xlu0 %1270, %v1217
      %v1272 = vpop.permute.xlu0 %1271
      %1275 = vset.pattern.permute.xlu0 2
      %1276 = vperm.xlu0 %1275, %v1218
      %v1277 = vpop.permute.xlu0 %1276
      %1280 = vset.pattern.permute.xlu0 2
      %1281 = vperm.xlu0 %1280, %v1219
      %v1282 = vpop.permute.xlu0 %1281
      %1285 = vset.pattern.permute.xlu0 2
      %1286 = vperm.xlu0 %1285, %v1220
      %v1287 = vpop.permute.xlu0 %1286
      %1290 = vset.pattern.permute.xlu0 2
      %1291 = vperm.xlu0 %1290, %v1221
      %v1292 = vpop.permute.xlu0 %1291
      %1295 = vset.pattern.permute.xlu0 2
      %1296 = vperm.xlu0 %1295, %v1222
      %v1297 = vpop.permute.xlu0 %1296
      %1300 = vset.pattern.permute.xlu0 2
      %1301 = vperm.xlu0 %1300, %v1223
      %v1302 = vpop.permute.xlu0 %1301
      %1305 = vset.pattern.permute.xlu0 2
      %1306 = vperm.xlu0 %1305, %v1224
      %v1307 = vpop.permute.xlu0 %1306
      %1310 = vset.pattern.permute.xlu0 2
      %1311 = vperm.xlu0 %1310, %v1225
      %v1312 = vpop.permute.xlu0 %1311
      %1315 = vset.pattern.permute.xlu0 2
      %1316 = vperm.xlu0 %1315, %v1226
      %v1317 = vpop.permute.xlu0 %1316
      %1320 = vset.pattern.permute.xlu0 2
      %1321 = vperm.xlu0 %1320, %v1227
      %v1322 = vpop.permute.xlu0 %1321
      %1325 = vset.pattern.permute.xlu0 2
      %1326 = vperm.xlu0 %1325, %v1228
      %v1327 = vpop.permute.xlu0 %1326
      %1330 = vset.pattern.permute.xlu0 2
      %1331 = vperm.xlu0 %1330, %v1229
      %v1332 = vpop.permute.xlu0 %1331
      %1335 = vset.pattern.permute.xlu0 2
      %1336 = vperm.xlu0 %1335, %v1230
      %v1337 = vpop.permute.xlu0 %1336
      %1340 = vset.pattern.permute.xlu0 2
      %1341 = vperm.xlu0 %1340, %v1231
      %v1342 = vpop.permute.xlu0 %1341
      %1345 = vset.pattern.permute.xlu0 2
      %1346 = vperm.xlu0 %1345, %v1232
      %v1347 = vpop.permute.xlu0 %1346
      %1350 = vset.pattern.permute.xlu0 2
      %1351 = vperm.xlu0 %1350, %v1233
      %v1352 = vpop.permute.xlu0 %1351
      %1355 = vset.pattern.permute.xlu0 2
      %1356 = vperm.xlu0 %1355, %v1234
      %v1357 = vpop.permute.xlu0 %1356
      %1360 = vset.pattern.permute.xlu0 2
      %1361 = vperm.xlu0 %1360, %v1235
      %v1362 = vpop.permute.xlu0 %1361
      %1365 = vset.pattern.permute.xlu0 2
      %1366 = vperm.xlu0 %1365, %v1236
      %v1367 = vpop.permute.xlu0 %1366
      %1370 = vset.pattern.permute.xlu0 2
      %1371 = vperm.xlu0 %1370, %v1237
      %v1372 = vpop.permute.xlu0 %1371
      %1375 = vset.pattern.permute.xlu0 2
      %1376 = vperm.xlu0 %1375, %v1238
      %v1377 = vpop.permute.xlu0 %1376
      %1380 = vset.pattern.permute.xlu0 2
      %1381 = vperm.xlu0 %1380, %v1239
      %v1382 = vpop.permute.xlu0 %1381
      %1385 = vset.pattern.permute.xlu0 2
      %1386 = vperm.xlu0 %1385, %v1240
      %v1387 = vpop.permute.xlu0 %1386
      %1390 = vset.pattern.permute.xlu0 2
      %1391 = vperm.xlu0 %1390, %v1241
      %v1392 = vpop.permute.xlu0 %1391
      %1395 = vset.pattern.permute.xlu0 2
      %1396 = vperm.xlu0 %1395, %v1242
      %v1397 = vpop.permute.xlu0 %1396
      %1400 = vset.pattern.permute.xlu0 2
      %1401 = vperm.xlu0 %1400, %v1243
      %v1402 = vpop.permute.xlu0 %1401
      %v1404 = vlaneseq
      %v1405 = vshrl.u32 %v1404, 7
      %v1406 = vsub.s32 2, %v1405
      %v1407 = vrot.slane %v363, %v1406
      %v1408 = vmul.f32 %v1247, %v1407
      %v1409 = vmul.f32 %v1252, %v1407
      %v1410 = vmul.f32 %v1257, %v1407
      %v1411 = vmul.f32 %v1262, %v1407
      %v1412 = vmul.f32 %v1267, %v1407
      %v1413 = vmul.f32 %v1272, %v1407
      %v1414 = vmul.f32 %v1277, %v1407
      %v1415 = vmul.f32 %v1282, %v1407
      %v1416 = vmul.f32 %v1287, %v1407
      %v1417 = vmul.f32 %v1292, %v1407
      %v1418 = vmul.f32 %v1297, %v1407
      %v1419 = vmul.f32 %v1302, %v1407
      %v1420 = vmul.f32 %v1307, %v1407
      %v1421 = vmul.f32 %v1312, %v1407
      %v1422 = vmul.f32 %v1317, %v1407
      %v1423 = vmul.f32 %v1322, %v1407
      %v1424 = vmul.f32 %v1327, %v1407
      %v1425 = vmul.f32 %v1332, %v1407
      %v1426 = vmul.f32 %v1337, %v1407
      %v1427 = vmul.f32 %v1342, %v1407
      %v1428 = vmul.f32 %v1347, %v1407
      %v1429 = vmul.f32 %v1352, %v1407
      %v1430 = vmul.f32 %v1357, %v1407
      %v1431 = vmul.f32 %v1362, %v1407
      %v1432 = vmul.f32 %v1367, %v1407
      %v1433 = vmul.f32 %v1372, %v1407
      %v1434 = vmul.f32 %v1377, %v1407
      %v1435 = vmul.f32 %v1382, %v1407
      %v1436 = vmul.f32 %v1387, %v1407
      %v1437 = vmul.f32 %v1392, %v1407
      %v1438 = vmul.f32 %v1397, %v1407
      %v1439 = vmul.f32 %v1402, %v1407
      %v1440 = vadd.f32 %v1180, %v1408
      %v1441 = vadd.f32 %v1181, %v1409
      %v1442 = vadd.f32 %v1182, %v1410
      %v1443 = vadd.f32 %v1183, %v1411
      %v1444 = vadd.f32 %v1184, %v1412
      %v1445 = vadd.f32 %v1185, %v1413
      %v1446 = vadd.f32 %v1186, %v1414
      %v1447 = vadd.f32 %v1187, %v1415
      %v1448 = vadd.f32 %v1188, %v1416
      %v1449 = vadd.f32 %v1189, %v1417
      %v1450 = vadd.f32 %v1190, %v1418
      %v1451 = vadd.f32 %v1191, %v1419
      %v1452 = vadd.f32 %v1192, %v1420
      %v1453 = vadd.f32 %v1193, %v1421
      %v1454 = vadd.f32 %v1194, %v1422
      %v1455 = vadd.f32 %v1195, %v1423
      %v1456 = vadd.f32 %v1196, %v1424
      %v1457 = vadd.f32 %v1197, %v1425
      %v1458 = vadd.f32 %v1198, %v1426
      %v1459 = vadd.f32 %v1199, %v1427
      %v1460 = vadd.f32 %v1200, %v1428
      %v1461 = vadd.f32 %v1201, %v1429
      %v1462 = vadd.f32 %v1202, %v1430
      %v1463 = vadd.f32 %v1203, %v1431
      %v1464 = vadd.f32 %v1204, %v1432
      %v1465 = vadd.f32 %v1205, %v1433
      %v1466 = vadd.f32 %v1206, %v1434
      %v1467 = vadd.f32 %v1207, %v1435
      %v1468 = vadd.f32 %v1208, %v1436
      %v1469 = vadd.f32 %v1209, %v1437
      %v1470 = vadd.f32 %v1210, %v1438
      %v1471 = vadd.f32 %v1211, %v1439
      %v1472 = vtanh.pop %v1440
      %v1473 = vtanh.pop %v1441
      %v1474 = vtanh.pop %v1442
      %v1475 = vtanh.pop %v1443
      %v1476 = vtanh.pop %v1444
      %v1477 = vtanh.pop %v1445
      %v1478 = vtanh.pop %v1446
      %v1479 = vtanh.pop %v1447
      %v1480 = vtanh.pop %v1448
      %v1481 = vtanh.pop %v1449
      %v1482 = vtanh.pop %v1450
      %v1483 = vtanh.pop %v1451
      %v1484 = vtanh.pop %v1452
      %v1485 = vtanh.pop %v1453
      %v1486 = vtanh.pop %v1454
      %v1487 = vtanh.pop %v1455
      %v1488 = vtanh.pop %v1456
      %v1489 = vtanh.pop %v1457
      %v1490 = vtanh.pop %v1458
      %v1491 = vtanh.pop %v1459
      %v1492 = vtanh.pop %v1460
      %v1493 = vtanh.pop %v1461
      %v1494 = vtanh.pop %v1462
      %v1495 = vtanh.pop %v1463
      %v1496 = vtanh.pop %v1464
      %v1497 = vtanh.pop %v1465
      %v1498 = vtanh.pop %v1466
      %v1499 = vtanh.pop %v1467
      %v1500 = vtanh.pop %v1468
      %v1501 = vtanh.pop %v1469
      %v1502 = vtanh.pop %v1470
      %v1503 = vtanh.pop %v1471
      %1505 = vset.pattern.permute.xlu0 3
      %1506 = vperm.xlu0 %1505, %v1472
      %v1507 = vpop.permute.xlu0 %1506
      %1510 = vset.pattern.permute.xlu0 3
      %1511 = vperm.xlu0 %1510, %v1473
      %v1512 = vpop.permute.xlu0 %1511
      %1515 = vset.pattern.permute.xlu0 3
      %1516 = vperm.xlu0 %1515, %v1474
      %v1517 = vpop.permute.xlu0 %1516
      %1520 = vset.pattern.permute.xlu0 3
      %1521 = vperm.xlu0 %1520, %v1475
      %v1522 = vpop.permute.xlu0 %1521
      %1525 = vset.pattern.permute.xlu0 3
      %1526 = vperm.xlu0 %1525, %v1476
      %v1527 = vpop.permute.xlu0 %1526
      %1530 = vset.pattern.permute.xlu0 3
      %1531 = vperm.xlu0 %1530, %v1477
      %v1532 = vpop.permute.xlu0 %1531
      %1535 = vset.pattern.permute.xlu0 3
      %1536 = vperm.xlu0 %1535, %v1478
      %v1537 = vpop.permute.xlu0 %1536
      %1540 = vset.pattern.permute.xlu0 3
      %1541 = vperm.xlu0 %1540, %v1479
      %v1542 = vpop.permute.xlu0 %1541
      %1545 = vset.pattern.permute.xlu0 3
      %1546 = vperm.xlu0 %1545, %v1480
      %v1547 = vpop.permute.xlu0 %1546
      %1550 = vset.pattern.permute.xlu0 3
      %1551 = vperm.xlu0 %1550, %v1481
      %v1552 = vpop.permute.xlu0 %1551
      %1555 = vset.pattern.permute.xlu0 3
      %1556 = vperm.xlu0 %1555, %v1482
      %v1557 = vpop.permute.xlu0 %1556
      %1560 = vset.pattern.permute.xlu0 3
      %1561 = vperm.xlu0 %1560, %v1483
      %v1562 = vpop.permute.xlu0 %1561
      %1565 = vset.pattern.permute.xlu0 3
      %1566 = vperm.xlu0 %1565, %v1484
      %v1567 = vpop.permute.xlu0 %1566
      %1570 = vset.pattern.permute.xlu0 3
      %1571 = vperm.xlu0 %1570, %v1485
      %v1572 = vpop.permute.xlu0 %1571
      %1575 = vset.pattern.permute.xlu0 3
      %1576 = vperm.xlu0 %1575, %v1486
      %v1577 = vpop.permute.xlu0 %1576
      %1580 = vset.pattern.permute.xlu0 3
      %1581 = vperm.xlu0 %1580, %v1487
      %v1582 = vpop.permute.xlu0 %1581
      %1585 = vset.pattern.permute.xlu0 3
      %1586 = vperm.xlu0 %1585, %v1488
      %v1587 = vpop.permute.xlu0 %1586
      %1590 = vset.pattern.permute.xlu0 3
      %1591 = vperm.xlu0 %1590, %v1489
      %v1592 = vpop.permute.xlu0 %1591
      %1595 = vset.pattern.permute.xlu0 3
      %1596 = vperm.xlu0 %1595, %v1490
      %v1597 = vpop.permute.xlu0 %1596
      %1600 = vset.pattern.permute.xlu0 3
      %1601 = vperm.xlu0 %1600, %v1491
      %v1602 = vpop.permute.xlu0 %1601
      %1605 = vset.pattern.permute.xlu0 3
      %1606 = vperm.xlu0 %1605, %v1492
      %v1607 = vpop.permute.xlu0 %1606
      %1610 = vset.pattern.permute.xlu0 3
      %1611 = vperm.xlu0 %1610, %v1493
      %v1612 = vpop.permute.xlu0 %1611
      %1615 = vset.pattern.permute.xlu0 3
      %1616 = vperm.xlu0 %1615, %v1494
      %v1617 = vpop.permute.xlu0 %1616
      %1620 = vset.pattern.permute.xlu0 3
      %1621 = vperm.xlu0 %1620, %v1495
      %v1622 = vpop.permute.xlu0 %1621
      %1625 = vset.pattern.permute.xlu0 3
      %1626 = vperm.xlu0 %1625, %v1496
      %v1627 = vpop.permute.xlu0 %1626
      %1630 = vset.pattern.permute.xlu0 3
      %1631 = vperm.xlu0 %1630, %v1497
      %v1632 = vpop.permute.xlu0 %1631
      %1635 = vset.pattern.permute.xlu0 3
      %1636 = vperm.xlu0 %1635, %v1498
      %v1637 = vpop.permute.xlu0 %1636
      %1640 = vset.pattern.permute.xlu0 3
      %1641 = vperm.xlu0 %1640, %v1499
      %v1642 = vpop.permute.xlu0 %1641
      %1645 = vset.pattern.permute.xlu0 3
      %1646 = vperm.xlu0 %1645, %v1500
      %v1647 = vpop.permute.xlu0 %1646
      %1650 = vset.pattern.permute.xlu0 3
      %1651 = vperm.xlu0 %1650, %v1501
      %v1652 = vpop.permute.xlu0 %1651
      %1655 = vset.pattern.permute.xlu0 3
      %1656 = vperm.xlu0 %1655, %v1502
      %v1657 = vpop.permute.xlu0 %1656
      %1660 = vset.pattern.permute.xlu0 3
      %1661 = vperm.xlu0 %1660, %v1503
      %v1662 = vpop.permute.xlu0 %1661
      %v1664 = vlaneseq
      %v1665 = vshrl.u32 %v1664, 7
      %v1666 = vsub.s32 3, %v1665
      %v1667 = vrot.slane %v363, %v1666
      %v1668 = vmul.f32 %v1507, %v1667
      %v1669 = vmul.f32 %v1512, %v1667
      %v1670 = vmul.f32 %v1517, %v1667
      %v1671 = vmul.f32 %v1522, %v1667
      %v1672 = vmul.f32 %v1527, %v1667
      %v1673 = vmul.f32 %v1532, %v1667
      %v1674 = vmul.f32 %v1537, %v1667
      %v1675 = vmul.f32 %v1542, %v1667
      %v1676 = vmul.f32 %v1547, %v1667
      %v1677 = vmul.f32 %v1552, %v1667
      %v1678 = vmul.f32 %v1557, %v1667
      %v1679 = vmul.f32 %v1562, %v1667
      %v1680 = vmul.f32 %v1567, %v1667
      %v1681 = vmul.f32 %v1572, %v1667
      %v1682 = vmul.f32 %v1577, %v1667
      %v1683 = vmul.f32 %v1582, %v1667
      %v1684 = vmul.f32 %v1587, %v1667
      %v1685 = vmul.f32 %v1592, %v1667
      %v1686 = vmul.f32 %v1597, %v1667
      %v1687 = vmul.f32 %v1602, %v1667
      %v1688 = vmul.f32 %v1607, %v1667
      %v1689 = vmul.f32 %v1612, %v1667
      %v1690 = vmul.f32 %v1617, %v1667
      %v1691 = vmul.f32 %v1622, %v1667
      %v1692 = vmul.f32 %v1627, %v1667
      %v1693 = vmul.f32 %v1632, %v1667
      %v1694 = vmul.f32 %v1637, %v1667
      %v1695 = vmul.f32 %v1642, %v1667
      %v1696 = vmul.f32 %v1647, %v1667
      %v1697 = vmul.f32 %v1652, %v1667
      %v1698 = vmul.f32 %v1657, %v1667
      %v1699 = vmul.f32 %v1662, %v1667
      %v1700 = vadd.f32 %v1440, %v1668
      %v1701 = vadd.f32 %v1441, %v1669
      %v1702 = vadd.f32 %v1442, %v1670
      %v1703 = vadd.f32 %v1443, %v1671
      %v1704 = vadd.f32 %v1444, %v1672
      %v1705 = vadd.f32 %v1445, %v1673
      %v1706 = vadd.f32 %v1446, %v1674
      %v1707 = vadd.f32 %v1447, %v1675
      %v1708 = vadd.f32 %v1448, %v1676
      %v1709 = vadd.f32 %v1449, %v1677
      %v1710 = vadd.f32 %v1450, %v1678
      %v1711 = vadd.f32 %v1451, %v1679
      %v1712 = vadd.f32 %v1452, %v1680
      %v1713 = vadd.f32 %v1453, %v1681
      %v1714 = vadd.f32 %v1454, %v1682
      %v1715 = vadd.f32 %v1455, %v1683
      %v1716 = vadd.f32 %v1456, %v1684
      %v1717 = vadd.f32 %v1457, %v1685
      %v1718 = vadd.f32 %v1458, %v1686
      %v1719 = vadd.f32 %v1459, %v1687
      %v1720 = vadd.f32 %v1460, %v1688
      %v1721 = vadd.f32 %v1461, %v1689
      %v1722 = vadd.f32 %v1462, %v1690
      %v1723 = vadd.f32 %v1463, %v1691
      %v1724 = vadd.f32 %v1464, %v1692
      %v1725 = vadd.f32 %v1465, %v1693
      %v1726 = vadd.f32 %v1466, %v1694
      %v1727 = vadd.f32 %v1467, %v1695
      %v1728 = vadd.f32 %v1468, %v1696
      %v1729 = vadd.f32 %v1469, %v1697
      %v1730 = vadd.f32 %v1470, %v1698
      %v1731 = vadd.f32 %v1471, %v1699
      %v1732 = vtanh.pop %v1700
      %v1733 = vtanh.pop %v1701
      %v1734 = vtanh.pop %v1702
      %v1735 = vtanh.pop %v1703
      %v1736 = vtanh.pop %v1704
      %v1737 = vtanh.pop %v1705
      %v1738 = vtanh.pop %v1706
      %v1739 = vtanh.pop %v1707
      %v1740 = vtanh.pop %v1708
      %v1741 = vtanh.pop %v1709
      %v1742 = vtanh.pop %v1710
      %v1743 = vtanh.pop %v1711
      %v1744 = vtanh.pop %v1712
      %v1745 = vtanh.pop %v1713
      %v1746 = vtanh.pop %v1714
      %v1747 = vtanh.pop %v1715
      %v1748 = vtanh.pop %v1716
      %v1749 = vtanh.pop %v1717
      %v1750 = vtanh.pop %v1718
      %v1751 = vtanh.pop %v1719
      %v1752 = vtanh.pop %v1720
      %v1753 = vtanh.pop %v1721
      %v1754 = vtanh.pop %v1722
      %v1755 = vtanh.pop %v1723
      %v1756 = vtanh.pop %v1724
      %v1757 = vtanh.pop %v1725
      %v1758 = vtanh.pop %v1726
      %v1759 = vtanh.pop %v1727
      %v1760 = vtanh.pop %v1728
      %v1761 = vtanh.pop %v1729
      %v1762 = vtanh.pop %v1730
      %v1763 = vtanh.pop %v1731
      %vm1764 = vcmask 31744
      %v1766 = vsel %vm1764, %v1732, 0
      %v1769 = vsel %vm1764, %v1733, 0
      %v1772 = vsel %vm1764, %v1734, 0
      %v1775 = vsel %vm1764, %v1735, 0
      %v1778 = vsel %vm1764, %v1736, 0
      %v1781 = vsel %vm1764, %v1737, 0
      %v1784 = vsel %vm1764, %v1738, 0
      %v1787 = vsel %vm1764, %v1739, 0
      %v1790 = vsel %vm1764, %v1740, 0
      %v1793 = vsel %vm1764, %v1741, 0
      %v1796 = vsel %vm1764, %v1742, 0
      %v1799 = vsel %vm1764, %v1743, 0
      %v1802 = vsel %vm1764, %v1744, 0
      %v1805 = vsel %vm1764, %v1745, 0
      %v1808 = vsel %vm1764, %v1746, 0
      %v1811 = vsel %vm1764, %v1747, 0
      %v1814 = vsel %vm1764, %v1748, 0
      %v1817 = vsel %vm1764, %v1749, 0
      %v1820 = vsel %vm1764, %v1750, 0
      %v1823 = vsel %vm1764, %v1751, 0
      %v1826 = vsel %vm1764, %v1752, 0
      %v1829 = vsel %vm1764, %v1753, 0
      %v1832 = vsel %vm1764, %v1754, 0
      %v1835 = vsel %vm1764, %v1755, 0
      %v1838 = vsel %vm1764, %v1756, 0
      %v1841 = vsel %vm1764, %v1757, 0
      %v1844 = vsel %vm1764, %v1758, 0
      %v1847 = vsel %vm1764, %v1759, 0
      %v1850 = vsel %vm1764, %v1760, 0
      %v1853 = vsel %vm1764, %v1761, 0
      %v1856 = vsel %vm1764, %v1762, 0
      %v1859 = vsel %vm1764, %v1763, 0
      %vm1861 = vcmask 1043456
      %v1863 = vsel %vm1861, %v359, 0
      %1865 = vmatprep.subr.mxu0 0.0
      %1866 = vmatpush1.msra.mxu0 %v1863
      %1867 = vmatprep.subr.mxu0 0.0
      %1868 = vmatpush1.msra.mxu0 0.0
      %1869 = vmatprep.subr.mxu0 0.0
      %1870 = vmatpush1.msra.mxu0 0.0
      %1871 = vmatprep.subr.mxu0 0.0
      %1872 = vmatpush1.msra.mxu0 0.0
      %1873 = vmatprep.subr.mxu0 0.0
      %1874 = vmatpush1.msra.mxu0 0.0
      %1875 = vmatprep.subr.mxu0 0.0
      %1876 = vmatpush1.msra.mxu0 0.0
      %1877 = vmatprep.subr.mxu0 0.0
      %1878 = vmatpush1.msra.mxu0 0.0
      %1879 = vmatprep.subr.mxu0 0.0
      %1880 = vmatpush1.msra.mxu0 0.0
      %1881 = vmatprep.subr.mxu0 0.0
      %1882 = vmatpush1.msra.mxu0 0.0
      %1883 = vmatprep.subr.mxu0 0.0
      %1884 = vmatpush1.msra.mxu0 0.0
      %1885 = vmatprep.subr.mxu0 0.0
      %1886 = vmatpush1.msra.mxu0 0.0
      %1887 = vmatprep.subr.mxu0 0.0
      %1888 = vmatpush1.msra.mxu0 0.0
      %1889 = vmatprep.subr.mxu0 0.0
      %1890 = vmatpush1.msra.mxu0 0.0
      %1891 = vmatprep.subr.mxu0 0.0
      %1892 = vmatpush1.msra.mxu0 0.0
      %1893 = vmatprep.subr.mxu0 0.0
      %1894 = vmatpush1.msra.mxu0 0.0
      %1895 = vmatprep.subr.mxu0 0.0
      %1896 = vmatpush1.msra.mxu0 0.0
      %1897 = vmatprep.subr.mxu0 0.0
      %1898 = vmatpush1.msra.mxu0 0.0
      %1899 = vmatprep.subr.mxu0 0.0
      %1900 = vmatpush1.msra.mxu0 0.0
      %1901 = vmatprep.subr.mxu0 0.0
      %1902 = vmatpush1.msra.mxu0 0.0
      %1903 = vmatprep.subr.mxu0 0.0
      %1904 = vmatpush1.msra.mxu0 0.0
      %1905 = vmatprep.subr.mxu0 0.0
      %1906 = vmatpush1.msra.mxu0 0.0
      %1907 = vmatprep.subr.mxu0 0.0
      %1908 = vmatpush1.msra.mxu0 0.0
      %1909 = vmatprep.subr.mxu0 0.0
      %1910 = vmatpush1.msra.mxu0 0.0
      %1911 = vmatprep.subr.mxu0 0.0
      %1912 = vmatpush1.msra.mxu0 0.0
      %1913 = vmatprep.subr.mxu0 0.0
      %1914 = vmatpush1.msra.mxu0 0.0
      %1915 = vmatprep.subr.mxu0 0.0
      %1916 = vmatpush1.msra.mxu0 0.0
      %1917 = vmatprep.subr.mxu0 0.0
      %1918 = vmatpush1.msra.mxu0 0.0
      %1919 = vmatprep.subr.mxu0 0.0
      %1920 = vmatpush1.msra.mxu0 0.0
      %1921 = vmatprep.subr.mxu0 0.0
      %1922 = vmatpush1.msra.mxu0 0.0
      %1923 = vmatprep.subr.mxu0 0.0
      %1924 = vmatpush1.msra.mxu0 0.0
      %1925 = vmatprep.subr.mxu0 0.0
      %1926 = vmatpush1.msra.mxu0 0.0
      %1927 = vmatprep.subr.mxu0 0.0
      %1928 = vmatpush1.msra.mxu0 0.0
      %1929 = vmatprep.mubr.f32.mxu0 0.0
      %1930 = vmatmul.mubr.f32.gmra.mrb[0].mxu0 %v1766
      %v1931 = vpop.f32.mrb[0].mxu0
      %v1932 = vadd.f32 0.0, %v1931
      %v1933 = vpop.f32.mrb[0].mxu0
      %1934 = vmatprep.mubr.f32.mxu0 0.0
      %1935 = vmatmul.mubr.f32.gmra.mrb[0].mxu0 %v1769
      %v1936 = vpop.f32.mrb[0].mxu0
      %v1937 = vadd.f32 0.0, %v1936
      %v1938 = vpop.f32.mrb[0].mxu0
      %1939 = vmatprep.mubr.f32.mxu0 0.0
      %1940 = vmatmul.mubr.f32.gmra.mrb[0].mxu0 %v1772
      %v1941 = vpop.f32.mrb[0].mxu0
      %v1942 = vadd.f32 0.0, %v1941
      %v1943 = vpop.f32.mrb[0].mxu0
      %1944 = vmatprep.mubr.f32.mxu0 0.0
      %1945 = vmatmul.mubr.f32.gmra.mrb[0].mxu0 %v1775
      %v1946 = vpop.f32.mrb[0].mxu0
      %v1947 = vadd.f32 0.0, %v1946
      %v1948 = vpop.f32.mrb[0].mxu0
      %1949 = vmatprep.mubr.f32.mxu0 0.0
      %1950 = vmatmul.mubr.f32.gmra.mrb[0].mxu0 %v1778
      %v1951 = vpop.f32.mrb[0].mxu0
      %v1952 = vadd.f32 0.0, %v1951
      %v1953 = vpop.f32.mrb[0].mxu0
      %1954 = vmatprep.mubr.f32.mxu0 0.0
      %1955 = vmatmul.mubr.f32.gmra.mrb[0].mxu0 %v1781
      %v1956 = vpop.f32.mrb[0].mxu0
      %v1957 = vadd.f32 0.0, %v1956
      %v1958 = vpop.f32.mrb[0].mxu0
      %1959 = vmatprep.mubr.f32.mxu0 0.0
      %1960 = vmatmul.mubr.f32.gmra.mrb[0].mxu0 %v1784
      %v1961 = vpop.f32.mrb[0].mxu0
      %v1962 = vadd.f32 0.0, %v1961
      %v1963 = vpop.f32.mrb[0].mxu0
      %1964 = vmatprep.mubr.f32.mxu0 0.0
      %1965 = vmatmul.mubr.f32.gmra.mrb[0].mxu0 %v1787
      %v1966 = vpop.f32.mrb[0].mxu0
      %v1967 = vadd.f32 0.0, %v1966
      %v1968 = vpop.f32.mrb[0].mxu0
      %1969 = vmatprep.mubr.f32.mxu0 0.0
      %1970 = vmatmul.mubr.f32.gmra.mrb[0].mxu0 %v1790
      %v1971 = vpop.f32.mrb[0].mxu0
      %v1972 = vadd.f32 0.0, %v1971
      %v1973 = vpop.f32.mrb[0].mxu0
      %1974 = vmatprep.mubr.f32.mxu0 0.0
      %1975 = vmatmul.mubr.f32.gmra.mrb[0].mxu0 %v1793
      %v1976 = vpop.f32.mrb[0].mxu0
      %v1977 = vadd.f32 0.0, %v1976
      %v1978 = vpop.f32.mrb[0].mxu0
      %1979 = vmatprep.mubr.f32.mxu0 0.0
      %1980 = vmatmul.mubr.f32.gmra.mrb[0].mxu0 %v1796
      %v1981 = vpop.f32.mrb[0].mxu0
      %v1982 = vadd.f32 0.0, %v1981
      %v1983 = vpop.f32.mrb[0].mxu0
      %1984 = vmatprep.mubr.f32.mxu0 0.0
      %1985 = vmatmul.mubr.f32.gmra.mrb[0].mxu0 %v1799
      %v1986 = vpop.f32.mrb[0].mxu0
      %v1987 = vadd.f32 0.0, %v1986
      %v1988 = vpop.f32.mrb[0].mxu0
      %1989 = vmatprep.mubr.f32.mxu0 0.0
      %1990 = vmatmul.mubr.f32.gmra.mrb[0].mxu0 %v1802
      %v1991 = vpop.f32.mrb[0].mxu0
      %v1992 = vadd.f32 0.0, %v1991
      %v1993 = vpop.f32.mrb[0].mxu0
      %1994 = vmatprep.mubr.f32.mxu0 0.0
      %1995 = vmatmul.mubr.f32.gmra.mrb[0].mxu0 %v1805
      %v1996 = vpop.f32.mrb[0].mxu0
      %v1997 = vadd.f32 0.0, %v1996
      %v1998 = vpop.f32.mrb[0].mxu0
      %1999 = vmatprep.mubr.f32.mxu0 0.0
      %2000 = vmatmul.mubr.f32.gmra.mrb[0].mxu0 %v1808
      %v2001 = vpop.f32.mrb[0].mxu0
      %v2002 = vadd.f32 0.0, %v2001
      %v2003 = vpop.f32.mrb[0].mxu0
      %2004 = vmatprep.mubr.f32.mxu0 0.0
      %2005 = vmatmul.mubr.f32.gmra.mrb[0].mxu0 %v1811
      %v2006 = vpop.f32.mrb[0].mxu0
      %v2007 = vadd.f32 0.0, %v2006
      %v2008 = vpop.f32.mrb[0].mxu0
      %2009 = vmatprep.mubr.f32.mxu0 0.0
      %2010 = vmatmul.mubr.f32.gmra.mrb[0].mxu0 %v1814
      %v2011 = vpop.f32.mrb[0].mxu0
      %v2012 = vadd.f32 0.0, %v2011
      %v2013 = vpop.f32.mrb[0].mxu0
      %2014 = vmatprep.mubr.f32.mxu0 0.0
      %2015 = vmatmul.mubr.f32.gmra.mrb[0].mxu0 %v1817
      %v2016 = vpop.f32.mrb[0].mxu0
      %v2017 = vadd.f32 0.0, %v2016
      %v2018 = vpop.f32.mrb[0].mxu0
      %2019 = vmatprep.mubr.f32.mxu0 0.0
      %2020 = vmatmul.mubr.f32.gmra.mrb[0].mxu0 %v1820
      %v2021 = vpop.f32.mrb[0].mxu0
      %v2022 = vadd.f32 0.0, %v2021
      %v2023 = vpop.f32.mrb[0].mxu0
      %2024 = vmatprep.mubr.f32.mxu0 0.0
      %2025 = vmatmul.mubr.f32.gmra.mrb[0].mxu0 %v1823
      %v2026 = vpop.f32.mrb[0].mxu0
      %v2027 = vadd.f32 0.0, %v2026
      %v2028 = vpop.f32.mrb[0].mxu0
      %2029 = vmatprep.mubr.f32.mxu0 0.0
      %2030 = vmatmul.mubr.f32.gmra.mrb[0].mxu0 %v1826
      %v2031 = vpop.f32.mrb[0].mxu0
      %v2032 = vadd.f32 0.0, %v2031
      %v2033 = vpop.f32.mrb[0].mxu0
      %2034 = vmatprep.mubr.f32.mxu0 0.0
      %2035 = vmatmul.mubr.f32.gmra.mrb[0].mxu0 %v1829
      %v2036 = vpop.f32.mrb[0].mxu0
      %v2037 = vadd.f32 0.0, %v2036
      %v2038 = vpop.f32.mrb[0].mxu0
      %2039 = vmatprep.mubr.f32.mxu0 0.0
      %2040 = vmatmul.mubr.f32.gmra.mrb[0].mxu0 %v1832
      %v2041 = vpop.f32.mrb[0].mxu0
      %v2042 = vadd.f32 0.0, %v2041
      %v2043 = vpop.f32.mrb[0].mxu0
      %2044 = vmatprep.mubr.f32.mxu0 0.0
      %2045 = vmatmul.mubr.f32.gmra.mrb[0].mxu0 %v1835
      %v2046 = vpop.f32.mrb[0].mxu0
      %v2047 = vadd.f32 0.0, %v2046
      %v2048 = vpop.f32.mrb[0].mxu0
      %2049 = vmatprep.mubr.f32.mxu0 0.0
      %2050 = vmatmul.mubr.f32.gmra.mrb[0].mxu0 %v1838
      %v2051 = vpop.f32.mrb[0].mxu0
      %v2052 = vadd.f32 0.0, %v2051
      %v2053 = vpop.f32.mrb[0].mxu0
      %2054 = vmatprep.mubr.f32.mxu0 0.0
      %2055 = vmatmul.mubr.f32.gmra.mrb[0].mxu0 %v1841
      %v2056 = vpop.f32.mrb[0].mxu0
      %v2057 = vadd.f32 0.0, %v2056
      %v2058 = vpop.f32.mrb[0].mxu0
      %2059 = vmatprep.mubr.f32.mxu0 0.0
      %2060 = vmatmul.mubr.f32.gmra.mrb[0].mxu0 %v1844
      %v2061 = vpop.f32.mrb[0].mxu0
      %v2062 = vadd.f32 0.0, %v2061
      %v2063 = vpop.f32.mrb[0].mxu0
      %2064 = vmatprep.mubr.f32.mxu0 0.0
      %2065 = vmatmul.mubr.f32.gmra.mrb[0].mxu0 %v1847
      %v2066 = vpop.f32.mrb[0].mxu0
      %v2067 = vadd.f32 0.0, %v2066
      %v2068 = vpop.f32.mrb[0].mxu0
      %2069 = vmatprep.mubr.f32.mxu0 0.0
      %2070 = vmatmul.mubr.f32.gmra.mrb[0].mxu0 %v1850
      %v2071 = vpop.f32.mrb[0].mxu0
      %v2072 = vadd.f32 0.0, %v2071
      %v2073 = vpop.f32.mrb[0].mxu0
      %2074 = vmatprep.mubr.f32.mxu0 0.0
      %2075 = vmatmul.mubr.f32.gmra.mrb[0].mxu0 %v1853
      %v2076 = vpop.f32.mrb[0].mxu0
      %v2077 = vadd.f32 0.0, %v2076
      %v2078 = vpop.f32.mrb[0].mxu0
      %2079 = vmatprep.mubr.f32.mxu0 0.0
      %2080 = vmatmul.mubr.f32.gmra.mrb[0].mxu0 %v1856
      %v2081 = vpop.f32.mrb[0].mxu0
      %v2082 = vadd.f32 0.0, %v2081
      %v2083 = vpop.f32.mrb[0].mxu0
      %2084 = vmatprep.mubr.f32.mxu0 0.0
      %2085 = vmatmul.mubr.f32.gmra.mrb[0].mxu0 %v1859
      %v2086 = vpop.f32.mrb[0].mxu0
      %v2087 = vadd.f32 0.0, %v2086
      %v2088 = vpop.f32.mrb[0].mxu0
      %2089 = vdwg.mxu0
      %v2090 = vadd.f32 %v323, %v1932
      %v2091 = vadd.f32 %v324, %v1937
      %v2092 = vadd.f32 %v325, %v1942
      %v2093 = vadd.f32 %v326, %v1947
      %v2094 = vadd.f32 %v327, %v1952
      %v2095 = vadd.f32 %v328, %v1957
      %v2096 = vadd.f32 %v329, %v1962
      %v2097 = vadd.f32 %v330, %v1967
      %v2098 = vadd.f32 %v331, %v1972
      %v2099 = vadd.f32 %v332, %v1977
      %v2100 = vadd.f32 %v333, %v1982
      %v2101 = vadd.f32 %v334, %v1987
      %v2102 = vadd.f32 %v335, %v1992
      %v2103 = vadd.f32 %v336, %v1997
      %v2104 = vadd.f32 %v337, %v2002
      %v2105 = vadd.f32 %v338, %v2007
      %v2106 = vadd.f32 %v339, %v2012
      %v2107 = vadd.f32 %v340, %v2017
      %v2108 = vadd.f32 %v341, %v2022
      %v2109 = vadd.f32 %v342, %v2027
      %v2110 = vadd.f32 %v343, %v2032
      %v2111 = vadd.f32 %v344, %v2037
      %v2112 = vadd.f32 %v345, %v2042
      %v2113 = vadd.f32 %v346, %v2047
      %v2114 = vadd.f32 %v347, %v2052
      %v2115 = vadd.f32 %v348, %v2057
      %v2116 = vadd.f32 %v349, %v2062
      %v2117 = vadd.f32 %v350, %v2067
      %v2118 = vadd.f32 %v351, %v2072
      %v2119 = vadd.f32 %v352, %v2077
      %v2120 = vadd.f32 %v353, %v2082
      %v2121 = vadd.f32 %v354, %v2087
      %2122 = vst.msk [vmem:[%s315] sm:$0xff] %vm370, %v2090
      %2123 = vst.msk [vmem:[%s315 + $0x8] sm:$0xff] %vm370, %v2091
      %2124 = vst.msk [vmem:[%s315 + $0x10] sm:$0xff] %vm370, %v2092
      %2125 = vst.msk [vmem:[%s315 + $0x18] sm:$0xff] %vm370, %v2093
      %2126 = vst.msk [vmem:[%s315 + $0x20] sm:$0xff] %vm370, %v2094
      %2127 = vst.msk [vmem:[%s315 + $0x28] sm:$0xff] %vm370, %v2095
      %2128 = vst.msk [vmem:[%s315 + $0x30] sm:$0xff] %vm370, %v2096
      %2129 = vst.msk [vmem:[%s315 + $0x38] sm:$0xff] %vm370, %v2097
      %2130 = vst.msk [vmem:[%s315 + $0x40] sm:$0xff] %vm370, %v2098
      %2131 = vst.msk [vmem:[%s315 + $0x48] sm:$0xff] %vm370, %v2099
      %2132 = vst.msk [vmem:[%s315 + $0x50] sm:$0xff] %vm370, %v2100
      %2133 = vst.msk [vmem:[%s315 + $0x58] sm:$0xff] %vm370, %v2101
      %2134 = vst.msk [vmem:[%s315 + $0x60] sm:$0xff] %vm370, %v2102
      %2135 = vst.msk [vmem:[%s315 + $0x68] sm:$0xff] %vm370, %v2103
      %2136 = vst.msk [vmem:[%s315 + $0x70] sm:$0xff] %vm370, %v2104
      %2137 = vst.msk [vmem:[%s315 + $0x78] sm:$0xff] %vm370, %v2105
      %2138 = vst.msk [vmem:[%s315 + $0x80] sm:$0xff] %vm370, %v2106
      %2139 = vst.msk [vmem:[%s315 + $0x88] sm:$0xff] %vm370, %v2107
      %2140 = vst.msk [vmem:[%s315 + $0x90] sm:$0xff] %vm370, %v2108
      %2141 = vst.msk [vmem:[%s315 + $0x98] sm:$0xff] %vm370, %v2109
      %2142 = vst.msk [vmem:[%s315 + $0xa0] sm:$0xff] %vm370, %v2110
      %2143 = vst.msk [vmem:[%s315 + $0xa8] sm:$0xff] %vm370, %v2111
      %2144 = vst.msk [vmem:[%s315 + $0xb0] sm:$0xff] %vm370, %v2112
      %2145 = vst.msk [vmem:[%s315 + $0xb8] sm:$0xff] %vm370, %v2113
      %2146 = vst.msk [vmem:[%s315 + $0xc0] sm:$0xff] %vm370, %v2114
      %2147 = vst.msk [vmem:[%s315 + $0xc8] sm:$0xff] %vm370, %v2115
      %2148 = vst.msk [vmem:[%s315 + $0xd0] sm:$0xff] %vm370, %v2116
      %2149 = vst.msk [vmem:[%s315 + $0xd8] sm:$0xff] %vm370, %v2117
      %2150 = vst.msk [vmem:[%s315 + $0xe0] sm:$0xff] %vm370, %v2118
      %2151 = vst.msk [vmem:[%s315 + $0xe8] sm:$0xff] %vm370, %v2119
      %2152 = vst.msk [vmem:[%s315 + $0xf0] sm:$0xff] %vm370, %v2120
      %2153 = vst.msk [vmem:[%s315 + $0xf8] sm:$0xff] %vm370, %v2121
      %v2155 = vlaneseq
      %v2156 = vshrl.u32 %v2155, 7
      %v2157 = vsub.s32 0, %v2156
      %v2158 = vrot.slane %v362, %v2157
      %v2160 = vmul.f32 %v2158, %v1732
      %v2161 = vmul.f32 %v2158, %v1733
      %v2162 = vmul.f32 %v2158, %v1734
      %v2163 = vmul.f32 %v2158, %v1735
      %v2164 = vmul.f32 %v2158, %v1736
      %v2165 = vmul.f32 %v2158, %v1737
      %v2166 = vmul.f32 %v2158, %v1738
      %v2167 = vmul.f32 %v2158, %v1739
      %v2168 = vmul.f32 %v2158, %v1740
      %v2169 = vmul.f32 %v2158, %v1741
      %v2170 = vmul.f32 %v2158, %v1742
      %v2171 = vmul.f32 %v2158, %v1743
      %v2172 = vmul.f32 %v2158, %v1744
      %v2173 = vmul.f32 %v2158, %v1745
      %v2174 = vmul.f32 %v2158, %v1746
      %v2175 = vmul.f32 %v2158, %v1747
      %v2176 = vmul.f32 %v2158, %v1748
      %v2177 = vmul.f32 %v2158, %v1749
      %v2178 = vmul.f32 %v2158, %v1750
      %v2179 = vmul.f32 %v2158, %v1751
      %v2180 = vmul.f32 %v2158, %v1752
      %v2181 = vmul.f32 %v2158, %v1753
      %v2182 = vmul.f32 %v2158, %v1754
      %v2183 = vmul.f32 %v2158, %v1755
      %v2184 = vmul.f32 %v2158, %v1756
      %v2185 = vmul.f32 %v2158, %v1757
      %v2186 = vmul.f32 %v2158, %v1758
      %v2187 = vmul.f32 %v2158, %v1759
      %v2188 = vmul.f32 %v2158, %v1760
      %v2189 = vmul.f32 %v2158, %v1761
      %v2190 = vmul.f32 %v2158, %v1762
      %v2191 = vmul.f32 %v2158, %v1763
      %v2192 = vadd.f32 %v1700, %v2160
      %v2193 = vadd.f32 %v1701, %v2161
      %v2194 = vadd.f32 %v1702, %v2162
      %v2195 = vadd.f32 %v1703, %v2163
      %v2196 = vadd.f32 %v1704, %v2164
      %v2197 = vadd.f32 %v1705, %v2165
      %v2198 = vadd.f32 %v1706, %v2166
      %v2199 = vadd.f32 %v1707, %v2167
      %v2200 = vadd.f32 %v1708, %v2168
      %v2201 = vadd.f32 %v1709, %v2169
      %v2202 = vadd.f32 %v1710, %v2170
      %v2203 = vadd.f32 %v1711, %v2171
      %v2204 = vadd.f32 %v1712, %v2172
      %v2205 = vadd.f32 %v1713, %v2173
      %v2206 = vadd.f32 %v1714, %v2174
      %v2207 = vadd.f32 %v1715, %v2175
      %v2208 = vadd.f32 %v1716, %v2176
      %v2209 = vadd.f32 %v1717, %v2177
      %v2210 = vadd.f32 %v1718, %v2178
      %v2211 = vadd.f32 %v1719, %v2179
      %v2212 = vadd.f32 %v1720, %v2180
      %v2213 = vadd.f32 %v1721, %v2181
      %v2214 = vadd.f32 %v1722, %v2182
      %v2215 = vadd.f32 %v1723, %v2183
      %v2216 = vadd.f32 %v1724, %v2184
      %v2217 = vadd.f32 %v1725, %v2185
      %v2218 = vadd.f32 %v1726, %v2186
      %v2219 = vadd.f32 %v1727, %v2187
      %v2220 = vadd.f32 %v1728, %v2188
      %v2221 = vadd.f32 %v1729, %v2189
      %v2222 = vadd.f32 %v1730, %v2190
      %v2223 = vadd.f32 %v1731, %v2191
      %v2224 = vtanh.pop %v2192
      %v2225 = vtanh.pop %v2193
      %v2226 = vtanh.pop %v2194
      %v2227 = vtanh.pop %v2195
      %v2228 = vtanh.pop %v2196
      %v2229 = vtanh.pop %v2197
      %v2230 = vtanh.pop %v2198
      %v2231 = vtanh.pop %v2199
      %v2232 = vtanh.pop %v2200
      %v2233 = vtanh.pop %v2201
      %v2234 = vtanh.pop %v2202
      %v2235 = vtanh.pop %v2203
      %v2236 = vtanh.pop %v2204
      %v2237 = vtanh.pop %v2205
      %v2238 = vtanh.pop %v2206
      %v2239 = vtanh.pop %v2207
      %v2240 = vtanh.pop %v2208
      %v2241 = vtanh.pop %v2209
      %v2242 = vtanh.pop %v2210
      %v2243 = vtanh.pop %v2211
      %v2244 = vtanh.pop %v2212
      %v2245 = vtanh.pop %v2213
      %v2246 = vtanh.pop %v2214
      %v2247 = vtanh.pop %v2215
      %v2248 = vtanh.pop %v2216
      %v2249 = vtanh.pop %v2217
      %v2250 = vtanh.pop %v2218
      %v2251 = vtanh.pop %v2219
      %v2252 = vtanh.pop %v2220
      %v2253 = vtanh.pop %v2221
      %v2254 = vtanh.pop %v2222
      %v2255 = vtanh.pop %v2223
      %v2256 = vmul.f32 %v2224, %v2224
      %v2257 = vmul.f32 %v2225, %v2225
      %v2258 = vmul.f32 %v2226, %v2226
      %v2259 = vmul.f32 %v2227, %v2227
      %v2260 = vmul.f32 %v2228, %v2228
      %v2261 = vmul.f32 %v2229, %v2229
      %v2262 = vmul.f32 %v2230, %v2230
      %v2263 = vmul.f32 %v2231, %v2231
      %v2264 = vmul.f32 %v2232, %v2232
      %v2265 = vmul.f32 %v2233, %v2233
      %v2266 = vmul.f32 %v2234, %v2234
      %v2267 = vmul.f32 %v2235, %v2235
      %v2268 = vmul.f32 %v2236, %v2236
      %v2269 = vmul.f32 %v2237, %v2237
      %v2270 = vmul.f32 %v2238, %v2238
      %v2271 = vmul.f32 %v2239, %v2239
      %v2272 = vmul.f32 %v2240, %v2240
      %v2273 = vmul.f32 %v2241, %v2241
      %v2274 = vmul.f32 %v2242, %v2242
      %v2275 = vmul.f32 %v2243, %v2243
      %v2276 = vmul.f32 %v2244, %v2244
      %v2277 = vmul.f32 %v2245, %v2245
      %v2278 = vmul.f32 %v2246, %v2246
      %v2279 = vmul.f32 %v2247, %v2247
      %v2280 = vmul.f32 %v2248, %v2248
      %v2281 = vmul.f32 %v2249, %v2249
      %v2282 = vmul.f32 %v2250, %v2250
      %v2283 = vmul.f32 %v2251, %v2251
      %v2284 = vmul.f32 %v2252, %v2252
      %v2285 = vmul.f32 %v2253, %v2253
      %v2286 = vmul.f32 %v2254, %v2254
      %v2287 = vmul.f32 %v2255, %v2255
      %v2288 = vsub.f32 1.0, %v2256
      %v2289 = vsub.f32 1.0, %v2257
      %v2290 = vsub.f32 1.0, %v2258
      %v2291 = vsub.f32 1.0, %v2259
      %v2292 = vsub.f32 1.0, %v2260
      %v2293 = vsub.f32 1.0, %v2261
      %v2294 = vsub.f32 1.0, %v2262
      %v2295 = vsub.f32 1.0, %v2263
      %v2296 = vsub.f32 1.0, %v2264
      %v2297 = vsub.f32 1.0, %v2265
      %v2298 = vsub.f32 1.0, %v2266
      %v2299 = vsub.f32 1.0, %v2267
      %v2300 = vsub.f32 1.0, %v2268
      %v2301 = vsub.f32 1.0, %v2269
      %v2302 = vsub.f32 1.0, %v2270
      %v2303 = vsub.f32 1.0, %v2271
      %v2304 = vsub.f32 1.0, %v2272
      %v2305 = vsub.f32 1.0, %v2273
      %v2306 = vsub.f32 1.0, %v2274
      %v2307 = vsub.f32 1.0, %v2275
      %v2308 = vsub.f32 1.0, %v2276
      %v2309 = vsub.f32 1.0, %v2277
      %v2310 = vsub.f32 1.0, %v2278
      %v2311 = vsub.f32 1.0, %v2279
      %v2312 = vsub.f32 1.0, %v2280
      %v2313 = vsub.f32 1.0, %v2281
      %v2314 = vsub.f32 1.0, %v2282
      %v2315 = vsub.f32 1.0, %v2283
      %v2316 = vsub.f32 1.0, %v2284
      %v2317 = vsub.f32 1.0, %v2285
      %v2318 = vsub.f32 1.0, %v2286
      %v2319 = vsub.f32 1.0, %v2287
      %v2321 = vlaneseq
      %v2322 = vshrl.u32 %v2321, 7
      %v2323 = vsub.s32 0, %v2322
      %v2324 = vrot.slane %v361, %v2323
      %v2326 = vmul.f32 %v2288, %v2324
      %v2327 = vmul.f32 %v2289, %v2324
      %v2328 = vmul.f32 %v2290, %v2324
      %v2329 = vmul.f32 %v2291, %v2324
      %v2330 = vmul.f32 %v2292, %v2324
      %v2331 = vmul.f32 %v2293, %v2324
      %v2332 = vmul.f32 %v2294, %v2324
      %v2333 = vmul.f32 %v2295, %v2324
      %v2334 = vmul.f32 %v2296, %v2324
      %v2335 = vmul.f32 %v2297, %v2324
      %v2336 = vmul.f32 %v2298, %v2324
      %v2337 = vmul.f32 %v2299, %v2324
      %v2338 = vmul.f32 %v2300, %v2324
      %v2339 = vmul.f32 %v2301, %v2324
      %v2340 = vmul.f32 %v2302, %v2324
      %v2341 = vmul.f32 %v2303, %v2324
      %v2342 = vmul.f32 %v2304, %v2324
      %v2343 = vmul.f32 %v2305, %v2324
      %v2344 = vmul.f32 %v2306, %v2324
      %v2345 = vmul.f32 %v2307, %v2324
      %v2346 = vmul.f32 %v2308, %v2324
      %v2347 = vmul.f32 %v2309, %v2324
      %v2348 = vmul.f32 %v2310, %v2324
      %v2349 = vmul.f32 %v2311, %v2324
      %v2350 = vmul.f32 %v2312, %v2324
      %v2351 = vmul.f32 %v2313, %v2324
      %v2352 = vmul.f32 %v2314, %v2324
      %v2353 = vmul.f32 %v2315, %v2324
      %v2354 = vmul.f32 %v2316, %v2324
      %v2355 = vmul.f32 %v2317, %v2324
      %v2356 = vmul.f32 %v2318, %v2324
      %v2357 = vmul.f32 %v2319, %v2324
      %v2358 = vadd.f32 %v2326, 1.0
      %v2359 = vadd.f32 %v2327, 1.0
      %v2360 = vadd.f32 %v2328, 1.0
      %v2361 = vadd.f32 %v2329, 1.0
      %v2362 = vadd.f32 %v2330, 1.0
      %v2363 = vadd.f32 %v2331, 1.0
      %v2364 = vadd.f32 %v2332, 1.0
      %v2365 = vadd.f32 %v2333, 1.0
      %v2366 = vadd.f32 %v2334, 1.0
      %v2367 = vadd.f32 %v2335, 1.0
      %v2368 = vadd.f32 %v2336, 1.0
      %v2369 = vadd.f32 %v2337, 1.0
      %v2370 = vadd.f32 %v2338, 1.0
      %v2371 = vadd.f32 %v2339, 1.0
      %v2372 = vadd.f32 %v2340, 1.0
      %v2373 = vadd.f32 %v2341, 1.0
      %v2374 = vadd.f32 %v2342, 1.0
      %v2375 = vadd.f32 %v2343, 1.0
      %v2376 = vadd.f32 %v2344, 1.0
      %v2377 = vadd.f32 %v2345, 1.0
      %v2378 = vadd.f32 %v2346, 1.0
      %v2379 = vadd.f32 %v2347, 1.0
      %v2380 = vadd.f32 %v2348, 1.0
      %v2381 = vadd.f32 %v2349, 1.0
      %v2382 = vadd.f32 %v2350, 1.0
      %v2383 = vadd.f32 %v2351, 1.0
      %v2384 = vadd.f32 %v2352, 1.0
      %v2385 = vadd.f32 %v2353, 1.0
      %v2386 = vadd.f32 %v2354, 1.0
      %v2387 = vadd.f32 %v2355, 1.0
      %v2388 = vadd.f32 %v2356, 1.0
      %v2389 = vadd.f32 %v2357, 1.0
      %v2390 = vand.u32 2147483647, %v2358
      %v2391 = vand.u32 2147483647, %v2359
      %v2392 = vand.u32 2147483647, %v2360
      %v2393 = vand.u32 2147483647, %v2361
      %v2394 = vand.u32 2147483647, %v2362
      %v2395 = vand.u32 2147483647, %v2363
      %v2396 = vand.u32 2147483647, %v2364
      %v2397 = vand.u32 2147483647, %v2365
      %v2398 = vand.u32 2147483647, %v2366
      %v2399 = vand.u32 2147483647, %v2367
      %v2400 = vand.u32 2147483647, %v2368
      %v2401 = vand.u32 2147483647, %v2369
      %v2402 = vand.u32 2147483647, %v2370
      %v2403 = vand.u32 2147483647, %v2371
      %v2404 = vand.u32 2147483647, %v2372
      %v2405 = vand.u32 2147483647, %v2373
      %v2406 = vand.u32 2147483647, %v2374
      %v2407 = vand.u32 2147483647, %v2375
      %v2408 = vand.u32 2147483647, %v2376
      %v2409 = vand.u32 2147483647, %v2377
      %v2410 = vand.u32 2147483647, %v2378
      %v2411 = vand.u32 2147483647, %v2379
      %v2412 = vand.u32 2147483647, %v2380
      %v2413 = vand.u32 2147483647, %v2381
      %v2414 = vand.u32 2147483647, %v2382
      %v2415 = vand.u32 2147483647, %v2383
      %v2416 = vand.u32 2147483647, %v2384
      %v2417 = vand.u32 2147483647, %v2385
      %v2418 = vand.u32 2147483647, %v2386
      %v2419 = vand.u32 2147483647, %v2387
      %v2420 = vand.u32 2147483647, %v2388
      %v2421 = vand.u32 2147483647, %v2389
      %v2422 = vadd.f32 %v2390, 0.0001
      %v2423 = vadd.f32 %v2391, 0.0001
      %v2424 = vadd.f32 %v2392, 0.0001
      %v2425 = vadd.f32 %v2393, 0.0001
      %v2426 = vadd.f32 %v2394, 0.0001
      %v2427 = vadd.f32 %v2395, 0.0001
      %v2428 = vadd.f32 %v2396, 0.0001
      %v2429 = vadd.f32 %v2397, 0.0001
      %v2430 = vadd.f32 %v2398, 0.0001
      %v2431 = vadd.f32 %v2399, 0.0001
      %v2432 = vadd.f32 %v2400, 0.0001
      %v2433 = vadd.f32 %v2401, 0.0001
      %v2434 = vadd.f32 %v2402, 0.0001
      %v2435 = vadd.f32 %v2403, 0.0001
      %v2436 = vadd.f32 %v2404, 0.0001
      %v2437 = vadd.f32 %v2405, 0.0001
      %v2438 = vadd.f32 %v2406, 0.0001
      %v2439 = vadd.f32 %v2407, 0.0001
      %v2440 = vadd.f32 %v2408, 0.0001
      %v2441 = vadd.f32 %v2409, 0.0001
      %v2442 = vadd.f32 %v2410, 0.0001
      %v2443 = vadd.f32 %v2411, 0.0001
      %v2444 = vadd.f32 %v2412, 0.0001
      %v2445 = vadd.f32 %v2413, 0.0001
      %v2446 = vadd.f32 %v2414, 0.0001
      %v2447 = vadd.f32 %v2415, 0.0001
      %v2448 = vadd.f32 %v2416, 0.0001
      %v2449 = vadd.f32 %v2417, 0.0001
      %v2450 = vadd.f32 %v2418, 0.0001
      %v2451 = vadd.f32 %v2419, 0.0001
      %v2452 = vadd.f32 %v2420, 0.0001
      %v2453 = vadd.f32 %v2421, 0.0001
      %v2454 = vlog2.pop %v2422
      %v2455 = vmul.f32 %v2454, 0.6931472
      %v2456 = vlog2.pop %v2423
      %v2457 = vmul.f32 %v2456, 0.6931472
      %v2458 = vlog2.pop %v2424
      %v2459 = vmul.f32 %v2458, 0.6931472
      %v2460 = vlog2.pop %v2425
      %v2461 = vmul.f32 %v2460, 0.6931472
      %v2462 = vlog2.pop %v2426
      %v2463 = vmul.f32 %v2462, 0.6931472
      %v2464 = vlog2.pop %v2427
      %v2465 = vmul.f32 %v2464, 0.6931472
      %v2466 = vlog2.pop %v2428
      %v2467 = vmul.f32 %v2466, 0.6931472
      %v2468 = vlog2.pop %v2429
      %v2469 = vmul.f32 %v2468, 0.6931472
      %v2470 = vlog2.pop %v2430
      %v2471 = vmul.f32 %v2470, 0.6931472
      %v2472 = vlog2.pop %v2431
      %v2473 = vmul.f32 %v2472, 0.6931472
      %v2474 = vlog2.pop %v2432
      %v2475 = vmul.f32 %v2474, 0.6931472
      %v2476 = vlog2.pop %v2433
      %v2477 = vmul.f32 %v2476, 0.6931472
      %v2478 = vlog2.pop %v2434
      %v2479 = vmul.f32 %v2478, 0.6931472
      %v2480 = vlog2.pop %v2435
      %v2481 = vmul.f32 %v2480, 0.6931472
      %v2482 = vlog2.pop %v2436
      %v2483 = vmul.f32 %v2482, 0.6931472
      %v2484 = vlog2.pop %v2437
      %v2485 = vmul.f32 %v2484, 0.6931472
      %v2486 = vlog2.pop %v2438
      %v2487 = vmul.f32 %v2486, 0.6931472
      %v2488 = vlog2.pop %v2439
      %v2489 = vmul.f32 %v2488, 0.6931472
      %v2490 = vlog2.pop %v2440
      %v2491 = vmul.f32 %v2490, 0.6931472
      %v2492 = vlog2.pop %v2441
      %v2493 = vmul.f32 %v2492, 0.6931472
      %v2494 = vlog2.pop %v2442
      %v2495 = vmul.f32 %v2494, 0.6931472
      %v2496 = vlog2.pop %v2443
      %v2497 = vmul.f32 %v2496, 0.6931472
      %v2498 = vlog2.pop %v2444
      %v2499 = vmul.f32 %v2498, 0.6931472
      %v2500 = vlog2.pop %v2445
      %v2501 = vmul.f32 %v2500, 0.6931472
      %v2502 = vlog2.pop %v2446
      %v2503 = vmul.f32 %v2502, 0.6931472
      %v2504 = vlog2.pop %v2447
      %v2505 = vmul.f32 %v2504, 0.6931472
      %v2506 = vlog2.pop %v2448
      %v2507 = vmul.f32 %v2506, 0.6931472
      %v2508 = vlog2.pop %v2449
      %v2509 = vmul.f32 %v2508, 0.6931472
      %v2510 = vlog2.pop %v2450
      %v2511 = vmul.f32 %v2510, 0.6931472
      %v2512 = vlog2.pop %v2451
      %v2513 = vmul.f32 %v2512, 0.6931472
      %v2514 = vlog2.pop %v2452
      %v2515 = vmul.f32 %v2514, 0.6931472
      %v2516 = vlog2.pop %v2453
      %v2517 = vmul.f32 %v2516, 0.6931472
      %v2518 = vsel %vm1764, %v2455, 0.0
      %2519 = vadd.xlane.f32.xlu0 %v2518
      %v2520 = vpop.xlane.xlu0 %2519
      %v2521 = vsel %vm1764, %v2457, 0.0
      %2522 = vadd.xlane.f32.xlu0 %v2521
      %v2523 = vpop.xlane.xlu0 %2522
      %v2524 = vsel %vm1764, %v2459, 0.0
      %2525 = vadd.xlane.f32.xlu0 %v2524
      %v2526 = vpop.xlane.xlu0 %2525
      %v2527 = vsel %vm1764, %v2461, 0.0
      %2528 = vadd.xlane.f32.xlu0 %v2527
      %v2529 = vpop.xlane.xlu0 %2528
      %v2530 = vsel %vm1764, %v2463, 0.0
      %2531 = vadd.xlane.f32.xlu0 %v2530
      %v2532 = vpop.xlane.xlu0 %2531
      %v2533 = vsel %vm1764, %v2465, 0.0
      %2534 = vadd.xlane.f32.xlu0 %v2533
      %v2535 = vpop.xlane.xlu0 %2534
      %v2536 = vsel %vm1764, %v2467, 0.0
      %2537 = vadd.xlane.f32.xlu0 %v2536
      %v2538 = vpop.xlane.xlu0 %2537
      %v2539 = vsel %vm1764, %v2469, 0.0
      %2540 = vadd.xlane.f32.xlu0 %v2539
      %v2541 = vpop.xlane.xlu0 %2540
      %v2542 = vsel %vm1764, %v2471, 0.0
      %2543 = vadd.xlane.f32.xlu0 %v2542
      %v2544 = vpop.xlane.xlu0 %2543
      %v2545 = vsel %vm1764, %v2473, 0.0
      %2546 = vadd.xlane.f32.xlu0 %v2545
      %v2547 = vpop.xlane.xlu0 %2546
      %v2548 = vsel %vm1764, %v2475, 0.0
      %2549 = vadd.xlane.f32.xlu0 %v2548
      %v2550 = vpop.xlane.xlu0 %2549
      %v2551 = vsel %vm1764, %v2477, 0.0
      %2552 = vadd.xlane.f32.xlu0 %v2551
      %v2553 = vpop.xlane.xlu0 %2552
      %v2554 = vsel %vm1764, %v2479, 0.0
      %2555 = vadd.xlane.f32.xlu0 %v2554
      %v2556 = vpop.xlane.xlu0 %2555
      %v2557 = vsel %vm1764, %v2481, 0.0
      %2558 = vadd.xlane.f32.xlu0 %v2557
      %v2559 = vpop.xlane.xlu0 %2558
      %v2560 = vsel %vm1764, %v2483, 0.0
      %2561 = vadd.xlane.f32.xlu0 %v2560
      %v2562 = vpop.xlane.xlu0 %2561
      %v2563 = vsel %vm1764, %v2485, 0.0
      %2564 = vadd.xlane.f32.xlu0 %v2563
      %v2565 = vpop.xlane.xlu0 %2564
      %v2566 = vsel %vm1764, %v2487, 0.0
      %2567 = vadd.xlane.f32.xlu0 %v2566
      %v2568 = vpop.xlane.xlu0 %2567
      %v2569 = vsel %vm1764, %v2489, 0.0
      %2570 = vadd.xlane.f32.xlu0 %v2569
      %v2571 = vpop.xlane.xlu0 %2570
      %v2572 = vsel %vm1764, %v2491, 0.0
      %2573 = vadd.xlane.f32.xlu0 %v2572
      %v2574 = vpop.xlane.xlu0 %2573
      %v2575 = vsel %vm1764, %v2493, 0.0
      %2576 = vadd.xlane.f32.xlu0 %v2575
      %v2577 = vpop.xlane.xlu0 %2576
      %v2578 = vsel %vm1764, %v2495, 0.0
      %2579 = vadd.xlane.f32.xlu0 %v2578
      %v2580 = vpop.xlane.xlu0 %2579
      %v2581 = vsel %vm1764, %v2497, 0.0
      %2582 = vadd.xlane.f32.xlu0 %v2581
      %v2583 = vpop.xlane.xlu0 %2582
      %v2584 = vsel %vm1764, %v2499, 0.0
      %2585 = vadd.xlane.f32.xlu0 %v2584
      %v2586 = vpop.xlane.xlu0 %2585
      %v2587 = vsel %vm1764, %v2501, 0.0
      %2588 = vadd.xlane.f32.xlu0 %v2587
      %v2589 = vpop.xlane.xlu0 %2588
      %v2590 = vsel %vm1764, %v2503, 0.0
      %2591 = vadd.xlane.f32.xlu0 %v2590
      %v2592 = vpop.xlane.xlu0 %2591
      %v2593 = vsel %vm1764, %v2505, 0.0
      %2594 = vadd.xlane.f32.xlu0 %v2593
      %v2595 = vpop.xlane.xlu0 %2594
      %v2596 = vsel %vm1764, %v2507, 0.0
      %2597 = vadd.xlane.f32.xlu0 %v2596
      %v2598 = vpop.xlane.xlu0 %2597
      %v2599 = vsel %vm1764, %v2509, 0.0
      %2600 = vadd.xlane.f32.xlu0 %v2599
      %v2601 = vpop.xlane.xlu0 %2600
      %v2602 = vsel %vm1764, %v2511, 0.0
      %2603 = vadd.xlane.f32.xlu0 %v2602
      %v2604 = vpop.xlane.xlu0 %2603
      %v2605 = vsel %vm1764, %v2513, 0.0
      %2606 = vadd.xlane.f32.xlu0 %v2605
      %v2607 = vpop.xlane.xlu0 %2606
      %v2608 = vsel %vm1764, %v2515, 0.0
      %2609 = vadd.xlane.f32.xlu0 %v2608
      %v2610 = vpop.xlane.xlu0 %2609
      %v2611 = vsel %vm1764, %v2517, 0.0
      %2612 = vadd.xlane.f32.xlu0 %v2611
      %v2613 = vpop.xlane.xlu0 %2612
      %vm2614 = vcmask 7168
      %2615 = vst.msk [vmem:[%s321] sm:$0xff] %vm2614, %v2520
      %2616 = vst.msk [vmem:[%s321 + $0x8] sm:$0xff] %vm2614, %v2523
      %2617 = vst.msk [vmem:[%s321 + $0x10] sm:$0xff] %vm2614, %v2526
      %2618 = vst.msk [vmem:[%s321 + $0x18] sm:$0xff] %vm2614, %v2529
      %2619 = vst.msk [vmem:[%s321 + $0x20] sm:$0xff] %vm2614, %v2532
      %2620 = vst.msk [vmem:[%s321 + $0x28] sm:$0xff] %vm2614, %v2535
      %2621 = vst.msk [vmem:[%s321 + $0x30] sm:$0xff] %vm2614, %v2538
      %2622 = vst.msk [vmem:[%s321 + $0x38] sm:$0xff] %vm2614, %v2541
      %2623 = vst.msk [vmem:[%s321 + $0x40] sm:$0xff] %vm2614, %v2544
      %2624 = vst.msk [vmem:[%s321 + $0x48] sm:$0xff] %vm2614, %v2547
      %2625 = vst.msk [vmem:[%s321 + $0x50] sm:$0xff] %vm2614, %v2550
      %2626 = vst.msk [vmem:[%s321 + $0x58] sm:$0xff] %vm2614, %v2553
      %2627 = vst.msk [vmem:[%s321 + $0x60] sm:$0xff] %vm2614, %v2556
      %2628 = vst.msk [vmem:[%s321 + $0x68] sm:$0xff] %vm2614, %v2559
      %2629 = vst.msk [vmem:[%s321 + $0x70] sm:$0xff] %vm2614, %v2562
      %2630 = vst.msk [vmem:[%s321 + $0x78] sm:$0xff] %vm2614, %v2565
      %2631 = vst.msk [vmem:[%s321 + $0x80] sm:$0xff] %vm2614, %v2568
      %2632 = vst.msk [vmem:[%s321 + $0x88] sm:$0xff] %vm2614, %v2571
      %2633 = vst.msk [vmem:[%s321 + $0x90] sm:$0xff] %vm2614, %v2574
      %2634 = vst.msk [vmem:[%s321 + $0x98] sm:$0xff] %vm2614, %v2577
      %2635 = vst.msk [vmem:[%s321 + $0xa0] sm:$0xff] %vm2614, %v2580
      %2636 = vst.msk [vmem:[%s321 + $0xa8] sm:$0xff] %vm2614, %v2583
      %2637 = vst.msk [vmem:[%s321 + $0xb0] sm:$0xff] %vm2614, %v2586
      %2638 = vst.msk [vmem:[%s321 + $0xb8] sm:$0xff] %vm2614, %v2589
      %2639 = vst.msk [vmem:[%s321 + $0xc0] sm:$0xff] %vm2614, %v2592
      %2640 = vst.msk [vmem:[%s321 + $0xc8] sm:$0xff] %vm2614, %v2595
      %2641 = vst.msk [vmem:[%s321 + $0xd0] sm:$0xff] %vm2614, %v2598
      %2642 = vst.msk [vmem:[%s321 + $0xd8] sm:$0xff] %vm2614, %v2601
      %2643 = vst.msk [vmem:[%s321 + $0xe0] sm:$0xff] %vm2614, %v2604
      %2644 = vst.msk [vmem:[%s321 + $0xe8] sm:$0xff] %vm2614, %v2607
      %2645 = vst.msk [vmem:[%s321 + $0xf0] sm:$0xff] %vm2614, %v2610
      %2646 = vst.msk [vmem:[%s321 + $0xf8] sm:$0xff] %vm2614, %v2613
      %s2647 = smul.u32 32, %s20
      %p2648 = scmp.lt.s32.totalorder %s2647, 63
      %s2649 = scalar_select %p2648, %s2647, 63
      %s2650 = smul.addr %s2649, 8
      %s2651 = scalar_lea.vmem %s7, %s2650
      %s2652 = smul.u32 32, %s20
      %p2653 = scmp.lt.s32.totalorder %s2652, 63
      %s2654 = scalar_select %p2653, %s2652, 63
      %s2655 = smul.addr %s2654, 8
      %s2656 = scalar_lea.vmem %s8, %s2655
      // Predicated region
      $region49: #{tpu_custom_call.1} parent=47 // pred_check
        %p2657 = pneg %p190
      $region50: #{tpu_custom_call.1} parent=47 // pred_check_branch
        %2659 = sbr.rel (%p2657) target = $region52
      $region51: #{tpu_custom_call.1} parent=47 // pred_region
        %s2660 = smul.u32 32, %s20
      $region52: #{tpu_custom_call.1} parent=47 // pred_fallthru
        _
      // Predicated region
      $region53: #{tpu_custom_call.1} parent=47 // pred_check
        %p2661 = pneg %p216
      $region54: #{tpu_custom_call.1} parent=47 // pred_check_branch
        %2663 = sbr.rel (%p2661) target = $region56
      $region55: #{tpu_custom_call.1} parent=47 // pred_region
        %s2664 = smul.u32 32, %s20
      $region56: #{tpu_custom_call.1} parent=47 // pred_fallthru
        _
    $region48: #{tpu_custom_call.1} parent=5 // pred_fallthru
      _
    %p2665 = scmp.le.s32.totalorder 2, %s15
    // Predicated region
    $region57: #{tpu_custom_call.1} parent=5 // pred_check
      %p2666 = pneg %p2665
    $region58: #{tpu_custom_call.1} parent=5 // pred_check_branch
      %2668 = sbr.rel (%p2666) target = $region60
    $region59: #{tpu_custom_call.1} parent=5 // pred_region
      %s2669 = ssub.s32 %s15, 2
      // Predicated region
      $region61: #{tpu_custom_call.1} parent=59 // pred_check
        %p2670 = pneg %p196
      $region62: #{tpu_custom_call.1} parent=59 // pred_check_branch
        %2672 = sbr.rel (%p2670) target = $region64
      $region63: #{tpu_custom_call.1} parent=59 // pred_region
        %s2673 = smul.u32 32, %s21
        %p2674 = scmp.lt.s32.totalorder %s2673, 63
        %s2675 = scalar_select %p2674, %s2673, 63
        %s2676 = smul.addr %s2675, 8
        %s2677 = scalar_lea.vmem %s7, %s2676
      $region64: #{tpu_custom_call.1} parent=59 // pred_fallthru
        _
      // Predicated region
      $region65: #{tpu_custom_call.1} parent=59 // pred_check
        %p2678 = pneg %p222
      $region66: #{tpu_custom_call.1} parent=59 // pred_check_branch
        %2680 = sbr.rel (%p2678) target = $region68
      $region67: #{tpu_custom_call.1} parent=59 // pred_region
        %s2681 = smul.u32 32, %s21
        %p2682 = scmp.lt.s32.totalorder %s2681, 63
        %s2683 = scalar_select %p2682, %s2681, 63
        %s2684 = smul.addr %s2683, 8
        %s2685 = scalar_lea.vmem %s8, %s2684
      $region68: #{tpu_custom_call.1} parent=59 // pred_fallthru
        _
    $region60: #{tpu_custom_call.1} parent=5 // pred_fallthru
      _
  $region6: #{tpu_custom_call.1} parent=0 // loop_footer
    %s19 = sadd.s32 1, %s15
  $region7: #{tpu_custom_call.1} parent=0 // loop_footer_branch
    %14 = sbr.rel target = $region3
  $region8: #{tpu_custom_call.1} parent=0 // loop_exit
    _

</llo_original>
